<compile_context>
chip_gen: v7x
topology: tpu7x:2x2x1
jax: 0.10.0
libtpu: 0.0.40
codegen_flags: <defaults>
</compile_context>

<pallas_src>
import functools

import jax
import jax.numpy as jnp
from jax.experimental import pallas as pl
from jax.experimental.pallas import tpu as pltpu


# ---------------------------------------------------------------------------
# Pallas kernel: one SAGEConv layer.
# Grid = (node-row tiles, neighbor/contraction tiles); reduction axis last.
# ---------------------------------------------------------------------------
def sage_layer_kernel(a_ref, xn_ref, xt_ref, dinv_ref, w_ref, b_ref, o_ref,
                      acc_ref, lhs_ref, *, f_p, apply_relu):
    # a_ref   : [tm, tn]    int8  edge counts (dst rows, src cols) block
    # xn_ref  : [tn, Fp]    bf16  neighbor features block
    # xt_ref  : [tm, Fp]    bf16  root features of this row tile
    # dinv_ref: [tm, 1]     f32   1 / in-degree for this row tile
    # w_ref   : [2Fp, Hp]   bf16  stacked [W_l ; W_r]
    # b_ref   : [1, Hp]     f32   bias (lin_l only)
    # acc_ref : [tm, Fp]    f32   VMEM scratch, running sum_j x_j
    # lhs_ref : [tm, 2Fp]   bf16  VMEM scratch, staged [agg | x_root]
    k = pl.program_id(1)
    last_k = pl.num_programs(1) - 1

    @pl.when(k == 0)
    def _():
        acc_ref[...] = jnp.zeros_like(acc_ref)
        lhs_ref[:, f_p:] = xt_ref[...]            # stage root features once per row tile

    a_blk = a_ref[...].astype(jnp.bfloat16)       # int8 counts are exact in bf16
    acc_ref[...] += jnp.dot(a_blk, xn_ref[...],
                            preferred_element_type=jnp.float32)

    @pl.when(k == last_k)
    def _():
        agg = acc_ref[...] * dinv_ref[...]        # mean_j x_j, f32 scale
        lhs_ref[:, :f_p] = agg.astype(jnp.bfloat16)
        out = jnp.dot(lhs_ref[...], w_ref[...],
                      preferred_element_type=jnp.float32)   # agg@W_l + x@W_r
        out = out + b_ref[...]                    # bias epilogue
        if apply_relu:
            out = jnp.maximum(out, 0.0)
        o_ref[...] = out.astype(o_ref.dtype)


def _sage_layer(a_p, dinv_p, x_p, w_cat, bias, *, apply_relu, out_dtype, tm, tn):
    n_p = a_p.shape[0]
    f_p = x_p.shape[1]
    h_p = w_cat.shape[1]
    grid = (n_p // tm, n_p // tn)

    kernel = functools.partial(sage_layer_kernel, f_p=f_p, apply_relu=apply_relu)

    flops = 2 * n_p * n_p * f_p + 2 * n_p * (2 * f_p) * h_p
    bytes_accessed = int(
        a_p.size * 1                                   # int8 adjacency counts, once
        + grid[0] * x_p.size * 2                       # neighbor stream, once per row tile
        + x_p.size * 2                                 # root tiles, once total
        + dinv_p.size * 4
        + w_cat.size * 2 + bias.size * 4
        + n_p * h_p * jnp.dtype(out_dtype).itemsize)

    return pl.pallas_call(
        kernel,
        out_shape=jax.ShapeDtypeStruct((n_p, h_p), out_dtype),
        grid_spec=pltpu.PrefetchScalarGridSpec(
            num_scalar_prefetch=0,
            grid=grid,
            in_specs=[
                pl.BlockSpec((tm, tn), lambda i, k: (i, k)),       # A block
                pl.BlockSpec((tn, f_p), lambda i, k: (k, 0)),      # neighbor features
                pl.BlockSpec((tm, f_p), lambda i, k: (i, 0)),      # root features
                pl.BlockSpec((tm, 1), lambda i, k: (i, 0)),        # 1/deg
                pl.BlockSpec((2 * f_p, h_p), lambda i, k: (0, 0)), # [W_l ; W_r]
                pl.BlockSpec((1, h_p), lambda i, k: (0, 0)),       # bias
            ],
            out_specs=pl.BlockSpec((tm, h_p), lambda i, k: (i, 0)),
            scratch_shapes=[
                pltpu.VMEM((tm, f_p), jnp.float32),       # agg accumulator
                pltpu.VMEM((tm, 2 * f_p), jnp.bfloat16),  # staged [agg | root]
            ],
        ),
        compiler_params=pltpu.CompilerParams(
            dimension_semantics=("parallel", "arbitrary")),
        cost_estimate=pl.CostEstimate(flops=flops, transcendentals=0,
                                      bytes_accessed=bytes_accessed),
    )(a_p, x_p, x_p, dinv_p, w_cat, bias)


# ---------------------------------------------------------------------------
# Wrapper: pad to lane/sublane-dense shapes, run both layers, un-pad.
# ---------------------------------------------------------------------------
def _round_up(v, m):
    return ((v + m - 1) // m) * m


def _pad2d(x, rows, cols):
    r, c = x.shape
    return jnp.pad(x, ((0, rows - r), (0, cols - c)))


def _pick_tn(n_p, cap):
    for t in (2048, 1024, 512, 256, 128):
        if t <= cap and n_p % t == 0:
            return t
    return 128


def gnn_forward_pallas(adj_counts, deg_inv, x, params, *, tm=256, tn_cap=512):
    n, f = x.shape
    hidden = params["w1l"].shape[1]
    out_ch = params["w2l"].shape[1]

    n_p = _round_up(n, tm)
    f_p = _round_up(f, 128)
    h_p = _round_up(hidden, 128)
    o_p = _round_up(out_ch, 128)
    tn = _pick_tn(n_p, tn_cap)

    a_p = _pad2d(adj_counts, n_p, n_p)                      # int8 edge counts
    dinv_p = _pad2d(deg_inv, n_p, 1).astype(jnp.float32)    # padded rows -> 0
    x_p = _pad2d(x, n_p, f_p).astype(jnp.bfloat16)

    w1 = jnp.concatenate([_pad2d(params["w1l"], f_p, h_p),
                          _pad2d(params["w1r"], f_p, h_p)], axis=0).astype(jnp.bfloat16)
    b1 = _pad2d(params["b1l"], 1, h_p).astype(jnp.float32)
    w2 = jnp.concatenate([_pad2d(params["w2l"], h_p, o_p),
                          _pad2d(params["w2r"], h_p, o_p)], axis=0).astype(jnp.bfloat16)
    b2 = _pad2d(params["b2l"], 1, o_p).astype(jnp.float32)

    h = _sage_layer(a_p, dinv_p, x_p, w1, b1, apply_relu=True,
                    out_dtype=jnp.bfloat16, tm=tm, tn=tn)
    out_p = _sage_layer(a_p, dinv_p, h, w2, b2, apply_relu=False,
                        out_dtype=jnp.float32, tm=tm, tn=tn)
    return out_p[:n, :out_ch]


# ---------------------------------------------------------------------------
# Glue (plain JAX): edge list -> dense int8 edge counts + f32 inverse in-degree.
# Mean aggregation = (counts @ x) * deg_inv, matching scatter-mean.
# ---------------------------------------------------------------------------
def build_adjacency_counts(edge_index, num_nodes):
    src = edge_index[0]
    dst = edge_index[1]
    counts = jnp.zeros((num_nodes, num_nodes), jnp.int32).at[dst, src].add(1)
    deg = jnp.sum(counts, axis=1, keepdims=True)
    deg_inv = 1.0 / jnp.maximum(deg, 1).astype(jnp.float32)  # isolated nodes -> 0 agg
    # NOTE: int8 overflows only if >127 duplicate edges share one (dst, src) pair.
    return counts.astype(jnp.int8), deg_inv


# ---------------------------------------------------------------------------
# Deterministic parameter init (SAGEConv: lin_l has bias, lin_r has none).
# Weights stored as [in, out] (transposed vs torch Linear).
# ---------------------------------------------------------------------------
def init_params(key, in_channels, hidden_channels, out_channels):
    keys = jax.random.split(key, 6)
    s1 = 1.0 / jnp.sqrt(jnp.float32(in_channels))
    s2 = 1.0 / jnp.sqrt(jnp.float32(hidden_channels))
    return {
        "w1l": s1 * jax.random.normal(keys[0], (in_channels, hidden_channels), jnp.float32),
        "w1r": s1 * jax.random.normal(keys[1], (in_channels, hidden_channels), jnp.float32),
        "b1l": 0.01 * jax.random.normal(keys[2], (1, hidden_channels), jnp.float32),
        "w2l": s2 * jax.random.normal(keys[3], (hidden_channels, out_channels), jnp.float32),
        "w2r": s2 * jax.random.normal(keys[4], (hidden_channels, out_channels), jnp.float32),
        "b2l": 0.01 * jax.random.normal(keys[5], (1, out_channels), jnp.float32),
    }


# Pure-JAX reference (low=bf16 mirrors the kernel's MXU input precision and the
# bf16 inter-layer activation).
def gnn_forward_ref(counts, deg_inv, x, p, low=jnp.float32):
    def mm(a, b):
        return jnp.dot(a.astype(low), b.astype(low),
                       preferred_element_type=jnp.float32)
    a_f32 = counts.astype(jnp.float32)
    agg1 = mm(a_f32, x) * deg_inv
    h = mm(agg1, p["w1l"]) + mm(x, p["w1r"]) + p["b1l"]
    h = jnp.maximum(h, 0.0)
    h = h.astype(low).astype(jnp.float32)     # layer-1 output dtype on the kernel path
    agg2 = mm(a_f32, h) * deg_inv
    out = mm(agg2, p["w2l"]) + mm(h, p["w2r"]) + p["b2l"]
    return out


if __name__ == "__main__":
    N = 200             # number of nodes (padded to 256 inside the wrapper)
    E = 800             # number of edges
    IN_CH = 32
    HIDDEN_CH = 64
    OUT_CH = 32

    key = jax.random.PRNGKey(0)
    k_x, k_src, k_dst, k_p = jax.random.split(key, 4)

    x = jax.random.normal(k_x, (N, IN_CH), jnp.float32)
    src = jax.random.randint(k_src, (E,), 0, N, jnp.int32)
    dst = jax.random.randint(k_dst, (E,), 0, N, jnp.int32)
    edge_index = jnp.stack([src, dst], axis=0)          # [2, E], row0=src, row1=dst

    params = init_params(k_p, IN_CH, HIDDEN_CH, OUT_CH)
    counts, deg_inv = build_adjacency_counts(edge_index, N)

    out = gnn_forward_pallas(counts, deg_inv, x, params)
    out = jax.block_until_ready(out)
    assert out.shape == (N, OUT_CH)

    # Kernel-exact check (same bf16 casts / f32 accumulation as the kernel).
    ref_bf16 = gnn_forward_ref(counts, deg_inv, x, params, low=jnp.bfloat16)
    assert jnp.allclose(out, ref_bf16, rtol=2e-2, atol=2e-2), \
        "Pallas output mismatch vs bf16-matched reference"

    # Semantic sanity check vs full-f32 reference (loose: bf16 quantization).
    ref_f32 = gnn_forward_ref(counts, deg_inv, x, params, low=jnp.float32)
    assert jnp.allclose(out, ref_f32, rtol=8e-2, atol=8e-2), \
        "Pallas output mismatch vs f32 reference"

    print("KERNEL_OK")
</pallas_src>

<mosaic_0001>
module attributes {stable_mosaic.version = 11 : i64} {
  func.func @sage_layer_kernel(%arg0: i32, %arg1: i32, %arg2: memref<256x256xi8, #tpu.memory_space<vmem>>, %arg3: memref<256x128xbf16, #tpu.memory_space<vmem>>, %arg4: memref<256x128xbf16, #tpu.memory_space<vmem>>, %arg5: memref<256x1xf32, #tpu.memory_space<vmem>>, %arg6: memref<256x128xbf16, #tpu.memory_space<vmem>>, %arg7: memref<1x128xf32, #tpu.memory_space<vmem>>, %arg8: memref<256x128xbf16, #tpu.memory_space<vmem>>, %arg9: memref<256x128xf32, #tpu.memory_space<vmem>>, %arg10: memref<256x256xbf16, #tpu.memory_space<vmem>>) attributes {dimension_semantics = [#tpu.dimension_semantics<parallel>, #tpu.dimension_semantics<arbitrary>], iteration_bounds = array<i64: 1, 1>, scalar_prefetch = 0 : i64, scratch_operands = 2 : i64, tpu.core_type = #tpu.core_type<tc>, window_params = [{transform_indices = @transform_0, window_bounds = array<i64: 256, 256>}, {transform_indices = @transform_1, window_bounds = array<i64: 256, 128>}, {transform_indices = @transform_2, window_bounds = array<i64: 256, 128>}, {transform_indices = @transform_3, window_bounds = array<i64: 256, 1>}, {pipeline_mode = #tpu.pipeline_mode<synchronous>, transform_indices = @transform_4, window_bounds = array<i64: 256, 128>}, {pipeline_mode = #tpu.pipeline_mode<synchronous>, transform_indices = @transform_5, window_bounds = array<i64: 1, 128>}, {transform_indices = @transform_6, window_bounds = array<i64: 256, 128>}]} {
    %c0_i32 = arith.constant 0 : i32
    %0 = arith.cmpi eq, %arg1, %c0_i32 : i32
    %1 = arith.extui %0 : i1 to i32
    %c0_i32_0 = arith.constant 0 : i32
    %2 = arith.cmpi ne, %1, %c0_i32_0 : i32
    scf.if %2 {
      %cst_10 = arith.constant 0.000000e+00 : f32
      %13 = vector.broadcast %cst_10 : f32 to vector<256x128xf32>
      %c0_11 = arith.constant 0 : index
      %c0_12 = arith.constant 0 : index
      %14 = vector.load %arg9[%c0_11, %c0_12] : memref<256x128xf32, #tpu.memory_space<vmem>>, vector<256x128xf32>
      tpu.vector_store %arg9[%c0_11, %c0_12], %13 {strides = array<i32>} : memref<256x128xf32, #tpu.memory_space<vmem>>, vector<256x128xf32>,
      %c0_13 = arith.constant 0 : index
      %c0_14 = arith.constant 0 : index
      %15 = vector.load %arg4[%c0_13, %c0_14] : memref<256x128xbf16, #tpu.memory_space<vmem>>, vector<256x128xbf16>
      %c0_15 = arith.constant 0 : index
      %c128 = arith.constant 128 : index
      %16 = vector.load %arg10[%c0_15, %c128] : memref<256x256xbf16, #tpu.memory_space<vmem>>, vector<256x128xbf16>
      tpu.vector_store %arg10[%c0_15, %c128], %15 {strides = array<i32>} : memref<256x256xbf16, #tpu.memory_space<vmem>>, vector<256x128xbf16>,
    } else {
    }
    %c0 = arith.constant 0 : index
    %c0_1 = arith.constant 0 : index
    %3 = vector.load %arg2[%c0, %c0_1] : memref<256x256xi8, #tpu.memory_space<vmem>>, vector<256x256xi8>
    %4 = arith.sitofp %3 : vector<256x256xi8> to vector<256x256xbf16>
    %c0_2 = arith.constant 0 : index
    %c0_3 = arith.constant 0 : index
    %5 = vector.load %arg9[%c0_2, %c0_3] : memref<256x128xf32, #tpu.memory_space<vmem>>, vector<256x128xf32>
    %c0_4 = arith.constant 0 : index
    %c0_5 = arith.constant 0 : index
    %6 = vector.load %arg3[%c0_4, %c0_5] : memref<256x128xbf16, #tpu.memory_space<vmem>>, vector<256x128xbf16>
    %cst = arith.constant dense<0.000000e+00> : vector<256x128xf32>
    %7 = tpu.matmul %4, %6, %cst {dimension_numbers = #tpu.dot_dimension_numbers<[1], [0], [0], [1], [0, 0, 1, 1], [], []>} : vector<256x256xbf16>, vector<256x128xbf16>, vector<256x128xf32> -> vector<256x128xf32>
    %8 = arith.addf %5, %7 : vector<256x128xf32>
    %c0_6 = arith.constant 0 : index
    %c0_7 = arith.constant 0 : index
    %9 = vector.load %arg9[%c0_6, %c0_7] : memref<256x128xf32, #tpu.memory_space<vmem>>, vector<256x128xf32>
    tpu.vector_store %arg9[%c0_6, %c0_7], %8 {strides = array<i32>} : memref<256x128xf32, #tpu.memory_space<vmem>>, vector<256x128xf32>,
    %c0_i32_8 = arith.constant 0 : i32
    %10 = arith.cmpi eq, %arg1, %c0_i32_8 : i32
    %11 = arith.extui %10 : i1 to i32
    %c0_i32_9 = arith.constant 0 : i32
    %12 = arith.cmpi ne, %11, %c0_i32_9 : i32
    scf.if %12 {
      %c0_10 = arith.constant 0 : index
      %c0_11 = arith.constant 0 : index
      %13 = vector.load %arg9[%c0_10, %c0_11] : memref<256x128xf32, #tpu.memory_space<vmem>>, vector<256x128xf32>
      %c0_12 = arith.constant 0 : index
      %c0_13 = arith.constant 0 : index
      %14 = vector.load %arg5[%c0_12, %c0_13] : memref<256x1xf32, #tpu.memory_space<vmem>>, vector<256x1xf32>
      %15 = vector.broadcast %14 : vector<256x1xf32> to vector<256x128xf32>
      %16 = arith.mulf %13, %15 : vector<256x128xf32>
      %17 = arith.truncf %16 : vector<256x128xf32> to vector<256x128xbf16>
      %c0_14 = arith.constant 0 : index
      %c0_15 = arith.constant 0 : index
      %18 = vector.load %arg10[%c0_14, %c0_15] : memref<256x256xbf16, #tpu.memory_space<vmem>>, vector<256x128xbf16>
      tpu.vector_store %arg10[%c0_14, %c0_15], %17 {strides = array<i32>} : memref<256x256xbf16, #tpu.memory_space<vmem>>, vector<256x128xbf16>,
      %c0_16 = arith.constant 0 : index
      %c0_17 = arith.constant 0 : index
      %19 = vector.load %arg10[%c0_16, %c0_17] : memref<256x256xbf16, #tpu.memory_space<vmem>>, vector<256x256xbf16>
      %c0_18 = arith.constant 0 : index
      %c0_19 = arith.constant 0 : index
      %20 = vector.load %arg6[%c0_18, %c0_19] : memref<256x128xbf16, #tpu.memory_space<vmem>>, vector<256x128xbf16>
      %cst_20 = arith.constant dense<0.000000e+00> : vector<256x128xf32>
      %21 = tpu.matmul %19, %20, %cst_20 {dimension_numbers = #tpu.dot_dimension_numbers<[1], [0], [0], [1], [0, 0, 1, 1], [], []>} : vector<256x256xbf16>, vector<256x128xbf16>, vector<256x128xf32> -> vector<256x128xf32>
      %c0_21 = arith.constant 0 : index
      %c0_22 = arith.constant 0 : index
      %22 = vector.load %arg7[%c0_21, %c0_22] : memref<1x128xf32, #tpu.memory_space<vmem>>, vector<1x128xf32>
      %23 = vector.broadcast %22 : vector<1x128xf32> to vector<256x128xf32>
      %24 = arith.addf %21, %23 : vector<256x128xf32>
      %cst_23 = arith.constant 0.000000e+00 : f32
      %25 = vector.broadcast %cst_23 : f32 to vector<256x128xf32>
      %26 = arith.maximumf %24, %25 : vector<256x128xf32>
      %27 = arith.truncf %26 : vector<256x128xf32> to vector<256x128xbf16>
      %c0_24 = arith.constant 0 : index
      %c0_25 = arith.constant 0 : index
      %28 = vector.load %arg8[%c0_24, %c0_25] : memref<256x128xbf16, #tpu.memory_space<vmem>>, vector<256x128xbf16>
      tpu.vector_store %arg8[%c0_24, %c0_25], %27 {strides = array<i32>} : memref<256x128xbf16, #tpu.memory_space<vmem>>, vector<256x128xbf16>,
    } else {
    }
    return
  }
  func.func @transform_0(%arg0: i32, %arg1: i32) -> (i32, i32) {
    %c0_i32 = arith.constant 0 : i32
    return %arg0, %arg1 : i32, i32
  }
  func.func @transform_1(%arg0: i32, %arg1: i32) -> (i32, i32) {
    %c0_i32 = arith.constant 0 : i32
    %c0_i32_0 = arith.constant 0 : i32
    return %arg1, %c0_i32 : i32, i32
  }
  func.func @transform_2(%arg0: i32, %arg1: i32) -> (i32, i32) {
    %c0_i32 = arith.constant 0 : i32
    %c0_i32_0 = arith.constant 0 : i32
    return %arg0, %c0_i32 : i32, i32
  }
  func.func @transform_3(%arg0: i32, %arg1: i32) -> (i32, i32) {
    %c0_i32 = arith.constant 0 : i32
    %c0_i32_0 = arith.constant 0 : i32
    return %arg0, %c0_i32 : i32, i32
  }
  func.func @transform_4(%arg0: i32, %arg1: i32) -> (i32, i32) {
    %c0_i32 = arith.constant 0 : i32
    %c0_i32_0 = arith.constant 0 : i32
    %c0_i32_1 = arith.constant 0 : i32
    return %c0_i32, %c0_i32_0 : i32, i32
  }
  func.func @transform_5(%arg0: i32, %arg1: i32) -> (i32, i32) {
    %c0_i32 = arith.constant 0 : i32
    %c0_i32_0 = arith.constant 0 : i32
    %c0_i32_1 = arith.constant 0 : i32
    return %c0_i32, %c0_i32_0 : i32, i32
  }
  func.func @transform_6(%arg0: i32, %arg1: i32) -> (i32, i32) {
    %c0_i32 = arith.constant 0 : i32
    %c0_i32_0 = arith.constant 0 : i32
    return %arg0, %c0_i32 : i32, i32
  }
}

</mosaic_0001>

<llo_original>
// kernel: tpu_custom_call.1
$region0: #{tpu_custom_call.1}
  #allocation0 [shape = 'u32[]', space=smem, size = 0x4, offset = 0x4, fixed_abs, tag = 'smem constant byte address 0x4 - core index']
  #allocation1 [shape = 'u32[144,128]{1,0:T(1,128)}', space=vmem, size = 0x12000, scoped, tag = 'internal scratch']
  #allocation2 [shape = 'f32[256,128]{1,0:T(8,128)}', space=vmem, size = 0x20000, scoped, tag = 'scratch operand']
  #allocation3 [shape = 'bf16[256,256]{1,0:T(16,128)(2,1)}', space=vmem, size = 0x20000, scoped, tag = 'scratch operand']
  %s0 = inlined_call_operand.vmem [shape: s8[256,256], index: 0, kind: input, shape index: {}]
  %s1 = inlined_call_operand.vmem [shape: bf16[256,128], index: 1, kind: input, shape index: {}]
  %s2 = inlined_call_operand.hbm [shape: bf16[256,128], index: 2, kind: input, shape index: {}]
  %s3 = inlined_call_operand.vmem [shape: f32[256,1], index: 3, kind: input, shape index: {}]
  %s4 = inlined_call_operand.hbm [shape: bf16[256,128], index: 4, kind: input, shape index: {}]
  %s5 = inlined_call_operand.vmem [shape: f32[1,128], index: 5, kind: input, shape index: {}]
  %s6 = inlined_call_operand.hbm [shape: bf16[256,128], index: 6, kind: output, shape index: {}]
  %s7 = sld [smem:[#allocation0]]
  $region50: #{tpu_custom_call.1} parent=0
    _
  %s9 = ssub.s32 1, %s7
  %s10 = scalar_select 0, %s9, %s7
  $region1: #{tpu_custom_call.1} parent=0
    #allocation4 [shape = 'u8[65536]{0}', space=vmem, size = 0x10000, scoped, tag = 'input window, operand 2, single buffered']
    #allocation5 [shape = 's32[1]{0}', space=sflag, size = 0x4, scoped, tag = 'scoped memory for tpu_custom_call.1']
    #allocation6 [shape = 's32[1]{0}', space=sflag, size = 0x4, scoped, tag = 'scoped memory for tpu_custom_call.1']
    #allocation7 [shape = 'u8[65536]{0}', space=vmem, size = 0x10000, scoped, tag = 'input window, operand 4, single buffered']
    #allocation8 [shape = 's32[1]{0}', space=sflag, size = 0x4, scoped, tag = 'scoped memory for tpu_custom_call.1']
    #allocation9 [shape = 'u8[65536]{0}', space=vmem, size = 0x10000, scoped, tag = 'output window, operand 0, single buffered']
    %11 = vsyncpa [#allocation5], 0
    %12 = vsyncpa [#allocation8], 0
    %13 = vsyncpa [#allocation6], 0
    // Predicated region
    $region2: #{tpu_custom_call.1} parent=1 // pred_check
      _
    $region3: #{tpu_custom_call.1} parent=1 // pred_check_branch
      %15 = sbr.rel (0) target = $region5
    $region4: #{tpu_custom_call.1} parent=1 // pred_region
      _
    $region5: #{tpu_custom_call.1} parent=1 // pred_fallthru
      _
    // Predicated region
    $region6: #{tpu_custom_call.1} parent=1 // pred_check
      _
    $region7: #{tpu_custom_call.1} parent=1 // pred_check_branch
      %17 = sbr.rel (0) target = $region9
    $region8: #{tpu_custom_call.1} parent=1 // pred_region
      _
    $region9: #{tpu_custom_call.1} parent=1 // pred_fallthru
      _
    // Predicated region
    $region10: #{tpu_custom_call.1} parent=1 // pred_check
      _
    $region11: #{tpu_custom_call.1} parent=1 // pred_check_branch
      %19 = sbr.rel (0) target = $region13
    $region12: #{tpu_custom_call.1} parent=1 // pred_region
      %s21 = ssub.s32 2048, 2048
      %22 = vsyncadd [#allocation5], %s21
      %s23 = sshll.u32 [#allocation4], 4
      %s24 = int_to_ptr.vmem [resolvable:$true] %s23
      %29 = dma.hbm_to_vmem [thread:$0]  %s2, 2048, %s24, [#allocation5], 64, 64, 4
    $region13: #{tpu_custom_call.1} parent=1 // pred_fallthru
      _
    // Predicated region
    $region14: #{tpu_custom_call.1} parent=1 // pred_check
      _
    $region15: #{tpu_custom_call.1} parent=1 // pred_check_branch
      %31 = sbr.rel (0) target = $region17
    $region16: #{tpu_custom_call.1} parent=1 // pred_region
      _
    $region17: #{tpu_custom_call.1} parent=1 // pred_fallthru
      _
    // Predicated region
    $region18: #{tpu_custom_call.1} parent=1 // pred_check
      _
    $region19: #{tpu_custom_call.1} parent=1 // pred_check_branch
      %33 = sbr.rel (0) target = $region21
    $region20: #{tpu_custom_call.1} parent=1 // pred_region
      %s35 = ssub.s32 2048, 2048
      %36 = vsyncadd [#allocation8], %s35
      %s37 = sshll.u32 [#allocation7], 4
      %s38 = int_to_ptr.vmem [resolvable:$true] %s37
      %43 = dma.hbm_to_vmem [thread:$0]  %s4, 2048, %s38, [#allocation8], 64, 64, 4
    $region21: #{tpu_custom_call.1} parent=1 // pred_fallthru
      _
    // Predicated region
    $region22: #{tpu_custom_call.1} parent=1 // pred_check
      _
    $region23: #{tpu_custom_call.1} parent=1 // pred_check_branch
      %45 = sbr.rel (0) target = $region25
    $region24: #{tpu_custom_call.1} parent=1 // pred_region
      _
    $region25: #{tpu_custom_call.1} parent=1 // pred_fallthru
      _
    // Predicated region
    $region26: #{tpu_custom_call.1} parent=1 // pred_check
      _
    $region27: #{tpu_custom_call.1} parent=1 // pred_check_branch
      %47 = sbr.rel (0) target = $region29
    $region28: #{tpu_custom_call.1} parent=1 // pred_region
      %48 = dma.done [#allocation5], 2048
    $region29: #{tpu_custom_call.1} parent=1 // pred_fallthru
      _
    // Predicated region
    $region30: #{tpu_custom_call.1} parent=1 // pred_check
      _
    $region31: #{tpu_custom_call.1} parent=1 // pred_check_branch
      %50 = sbr.rel (0) target = $region33
    $region32: #{tpu_custom_call.1} parent=1 // pred_region
      %51 = dma.done [#allocation8], 2048
    $region33: #{tpu_custom_call.1} parent=1 // pred_fallthru
      _
    %p53 = scmp.eq.s32.totalorder 0, 0
    // Predicated region
    $region34: #{tpu_custom_call.1} parent=1 // pred_check
      %p54 = pneg %p53
    $region35: #{tpu_custom_call.1} parent=1 // pred_check_branch
      %56 = sbr.rel (%p54) target = $region37
    $region36: #{tpu_custom_call.1} parent=1 // pred_region
      %57 = vst [vmem:[#allocation2] sm:$0xff] 0.0
      %58 = vst [vmem:[#allocation2 + $0x8] sm:$0xff] 0.0
      %59 = vst [vmem:[#allocation2 + $0x10] sm:$0xff] 0.0
      %60 = vst [vmem:[#allocation2 + $0x18] sm:$0xff] 0.0
      %61 = vst [vmem:[#allocation2 + $0x20] sm:$0xff] 0.0
      %62 = vst [vmem:[#allocation2 + $0x28] sm:$0xff] 0.0
      %63 = vst [vmem:[#allocation2 + $0x30] sm:$0xff] 0.0
      %64 = vst [vmem:[#allocation2 + $0x38] sm:$0xff] 0.0
      %65 = vst [vmem:[#allocation2 + $0x40] sm:$0xff] 0.0
      %66 = vst [vmem:[#allocation2 + $0x48] sm:$0xff] 0.0
      %67 = vst [vmem:[#allocation2 + $0x50] sm:$0xff] 0.0
      %68 = vst [vmem:[#allocation2 + $0x58] sm:$0xff] 0.0
      %69 = vst [vmem:[#allocation2 + $0x60] sm:$0xff] 0.0
      %70 = vst [vmem:[#allocation2 + $0x68] sm:$0xff] 0.0
      %71 = vst [vmem:[#allocation2 + $0x70] sm:$0xff] 0.0
      %72 = vst [vmem:[#allocation2 + $0x78] sm:$0xff] 0.0
      %73 = vst [vmem:[#allocation2 + $0x80] sm:$0xff] 0.0
      %74 = vst [vmem:[#allocation2 + $0x88] sm:$0xff] 0.0
      %75 = vst [vmem:[#allocation2 + $0x90] sm:$0xff] 0.0
      %76 = vst [vmem:[#allocation2 + $0x98] sm:$0xff] 0.0
      %77 = vst [vmem:[#allocation2 + $0xa0] sm:$0xff] 0.0
      %78 = vst [vmem:[#allocation2 + $0xa8] sm:$0xff] 0.0
      %79 = vst [vmem:[#allocation2 + $0xb0] sm:$0xff] 0.0
      %80 = vst [vmem:[#allocation2 + $0xb8] sm:$0xff] 0.0
      %81 = vst [vmem:[#allocation2 + $0xc0] sm:$0xff] 0.0
      %82 = vst [vmem:[#allocation2 + $0xc8] sm:$0xff] 0.0
      %83 = vst [vmem:[#allocation2 + $0xd0] sm:$0xff] 0.0
      %84 = vst [vmem:[#allocation2 + $0xd8] sm:$0xff] 0.0
      %85 = vst [vmem:[#allocation2 + $0xe0] sm:$0xff] 0.0
      %86 = vst [vmem:[#allocation2 + $0xe8] sm:$0xff] 0.0
      %87 = vst [vmem:[#allocation2 + $0xf0] sm:$0xff] 0.0
      %88 = vst [vmem:[#allocation2 + $0xf8] sm:$0xff] 0.0
      %v89 = vld [vmem:[#allocation4] sm:$0xf]
      %v90 = vld [vmem:[#allocation4 + $0x4] sm:$0xf]
      %v91 = vld [vmem:[#allocation4 + $0x8] sm:$0xf]
      %v92 = vld [vmem:[#allocation4 + $0xc] sm:$0xf]
      %v93 = vld [vmem:[#allocation4 + $0x10] sm:$0xf]
      %v94 = vld [vmem:[#allocation4 + $0x14] sm:$0xf]
      %v95 = vld [vmem:[#allocation4 + $0x18] sm:$0xf]
      %v96 = vld [vmem:[#allocation4 + $0x1c] sm:$0xf]
      %v97 = vld [vmem:[#allocation4 + $0x20] sm:$0xf]
      %v98 = vld [vmem:[#allocation4 + $0x24] sm:$0xf]
      %v99 = vld [vmem:[#allocation4 + $0x28] sm:$0xf]
      %v100 = vld [vmem:[#allocation4 + $0x2c] sm:$0xf]
      %v101 = vld [vmem:[#allocation4 + $0x30] sm:$0xf]
      %v102 = vld [vmem:[#allocation4 + $0x34] sm:$0xf]
      %v103 = vld [vmem:[#allocation4 + $0x38] sm:$0xf]
      %v104 = vld [vmem:[#allocation4 + $0x3c] sm:$0xf]
      %v105 = vld [vmem:[#allocation4 + $0x40] sm:$0xf]
      %v106 = vld [vmem:[#allocation4 + $0x44] sm:$0xf]
      %v107 = vld [vmem:[#allocation4 + $0x48] sm:$0xf]
      %v108 = vld [vmem:[#allocation4 + $0x4c] sm:$0xf]
      %v109 = vld [vmem:[#allocation4 + $0x50] sm:$0xf]
      %v110 = vld [vmem:[#allocation4 + $0x54] sm:$0xf]
      %v111 = vld [vmem:[#allocation4 + $0x58] sm:$0xf]
      %v112 = vld [vmem:[#allocation4 + $0x5c] sm:$0xf]
      %v113 = vld [vmem:[#allocation4 + $0x60] sm:$0xf]
      %v114 = vld [vmem:[#allocation4 + $0x64] sm:$0xf]
      %v115 = vld [vmem:[#allocation4 + $0x68] sm:$0xf]
      %v116 = vld [vmem:[#allocation4 + $0x6c] sm:$0xf]
      %v117 = vld [vmem:[#allocation4 + $0x70] sm:$0xf]
      %v118 = vld [vmem:[#allocation4 + $0x74] sm:$0xf]
      %v119 = vld [vmem:[#allocation4 + $0x78] sm:$0xf]
      %v120 = vld [vmem:[#allocation4 + $0x7c] sm:$0xf]
      %v153 = vunpack.c.l.b16 %v89
      %v154 = vunpack.c.l.b16 %v90
      %v155 = vunpack.c.l.b16 %v91
      %v156 = vunpack.c.l.b16 %v92
      %v157 = vunpack.c.l.b16 %v93
      %v158 = vunpack.c.l.b16 %v94
      %v159 = vunpack.c.l.b16 %v95
      %v160 = vunpack.c.l.b16 %v96
      %v161 = vunpack.c.l.b16 %v97
      %v162 = vunpack.c.l.b16 %v98
      %v163 = vunpack.c.l.b16 %v99
      %v164 = vunpack.c.l.b16 %v100
      %v165 = vunpack.c.l.b16 %v101
      %v166 = vunpack.c.l.b16 %v102
      %v167 = vunpack.c.l.b16 %v103
      %v168 = vunpack.c.l.b16 %v104
      %v169 = vunpack.c.l.b16 %v105
      %v170 = vunpack.c.l.b16 %v106
      %v171 = vunpack.c.l.b16 %v107
      %v172 = vunpack.c.l.b16 %v108
      %v173 = vunpack.c.l.b16 %v109
      %v174 = vunpack.c.l.b16 %v110
      %v175 = vunpack.c.l.b16 %v111
      %v176 = vunpack.c.l.b16 %v112
      %v177 = vunpack.c.l.b16 %v113
      %v178 = vunpack.c.l.b16 %v114
      %v179 = vunpack.c.l.b16 %v115
      %v180 = vunpack.c.l.b16 %v116
      %v181 = vunpack.c.l.b16 %v117
      %v182 = vunpack.c.l.b16 %v118
      %v183 = vunpack.c.l.b16 %v119
      %v184 = vunpack.c.l.b16 %v120
      %v185 = vpack.c.b16 %v154, %v153
      %v186 = vpack.c.b16 %v156, %v155
      %v187 = vpack.c.b16 %v158, %v157
      %v188 = vpack.c.b16 %v160, %v159
      %v189 = vpack.c.b16 %v162, %v161
      %v190 = vpack.c.b16 %v164, %v163
      %v191 = vpack.c.b16 %v166, %v165
      %v192 = vpack.c.b16 %v168, %v167
      %v193 = vpack.c.b16 %v170, %v169
      %v194 = vpack.c.b16 %v172, %v171
      %v195 = vpack.c.b16 %v174, %v173
      %v196 = vpack.c.b16 %v176, %v175
      %v197 = vpack.c.b16 %v178, %v177
      %v198 = vpack.c.b16 %v180, %v179
      %v199 = vpack.c.b16 %v182, %v181
      %v200 = vpack.c.b16 %v184, %v183
      %217 = vst [vmem:[#allocation3 + $0x8] sm:$0xff] %v185
      %218 = vst [vmem:[#allocation3 + $0x18] sm:$0xff] %v186
      %219 = vst [vmem:[#allocation3 + $0x28] sm:$0xff] %v187
      %220 = vst [vmem:[#allocation3 + $0x38] sm:$0xff] %v188
      %221 = vst [vmem:[#allocation3 + $0x48] sm:$0xff] %v189
      %222 = vst [vmem:[#allocation3 + $0x58] sm:$0xff] %v190
      %223 = vst [vmem:[#allocation3 + $0x68] sm:$0xff] %v191
      %224 = vst [vmem:[#allocation3 + $0x78] sm:$0xff] %v192
      %225 = vst [vmem:[#allocation3 + $0x88] sm:$0xff] %v193
      %226 = vst [vmem:[#allocation3 + $0x98] sm:$0xff] %v194
      %227 = vst [vmem:[#allocation3 + $0xa8] sm:$0xff] %v195
      %228 = vst [vmem:[#allocation3 + $0xb8] sm:$0xff] %v196
      %229 = vst [vmem:[#allocation3 + $0xc8] sm:$0xff] %v197
      %230 = vst [vmem:[#allocation3 + $0xd8] sm:$0xff] %v198
      %231 = vst [vmem:[#allocation3 + $0xe8] sm:$0xff] %v199
      %232 = vst [vmem:[#allocation3 + $0xf8] sm:$0xff] %v200
    $region37: #{tpu_custom_call.1} parent=1 // pred_fallthru
      _
    %v233 = vld [vmem:[%s0] sm:$0xff]
    %v234 = vld [vmem:[%s0 + $0x8] sm:$0xff]
    %v235 = vld [vmem:[%s0 + $0x10] sm:$0xff]
    %v236 = vld [vmem:[%s0 + $0x18] sm:$0xff]
    %v237 = vld [vmem:[%s0 + $0x20] sm:$0xff]
    %v238 = vld [vmem:[%s0 + $0x28] sm:$0xff]
    %v239 = vld [vmem:[%s0 + $0x30] sm:$0xff]
    %v240 = vld [vmem:[%s0 + $0x38] sm:$0xff]
    %v241 = vld [vmem:[%s0 + $0x40] sm:$0xff]
    %v242 = vld [vmem:[%s0 + $0x48] sm:$0xff]
    %v243 = vld [vmem:[%s0 + $0x50] sm:$0xff]
    %v244 = vld [vmem:[%s0 + $0x58] sm:$0xff]
    %v245 = vld [vmem:[%s0 + $0x60] sm:$0xff]
    %v246 = vld [vmem:[%s0 + $0x68] sm:$0xff]
    %v247 = vld [vmem:[%s0 + $0x70] sm:$0xff]
    %v248 = vld [vmem:[%s0 + $0x78] sm:$0xff]
    %v249 = vunpack.c.l.s8.bf16 %v233
    %v250 = vunpack.c.l.s8.bf16 %v234
    %v251 = vunpack.c.h.s8.bf16 %v233
    %v252 = vunpack.c.h.s8.bf16 %v234
    %v253 = vunpack.c.l.s8.bf16 %v235
    %v254 = vunpack.c.l.s8.bf16 %v236
    %v255 = vunpack.c.h.s8.bf16 %v235
    %v256 = vunpack.c.h.s8.bf16 %v236
    %v257 = vunpack.c.l.s8.bf16 %v237
    %v258 = vunpack.c.l.s8.bf16 %v238
    %v259 = vunpack.c.h.s8.bf16 %v237
    %v260 = vunpack.c.h.s8.bf16 %v238
    %v261 = vunpack.c.l.s8.bf16 %v239
    %v262 = vunpack.c.l.s8.bf16 %v240
    %v263 = vunpack.c.h.s8.bf16 %v239
    %v264 = vunpack.c.h.s8.bf16 %v240
    %v265 = vunpack.c.l.s8.bf16 %v241
    %v266 = vunpack.c.l.s8.bf16 %v242
    %v267 = vunpack.c.h.s8.bf16 %v241
    %v268 = vunpack.c.h.s8.bf16 %v242
    %v269 = vunpack.c.l.s8.bf16 %v243
    %v270 = vunpack.c.l.s8.bf16 %v244
    %v271 = vunpack.c.h.s8.bf16 %v243
    %v272 = vunpack.c.h.s8.bf16 %v244
    %v273 = vunpack.c.l.s8.bf16 %v245
    %v274 = vunpack.c.l.s8.bf16 %v246
    %v275 = vunpack.c.h.s8.bf16 %v245
    %v276 = vunpack.c.h.s8.bf16 %v246
    %v277 = vunpack.c.l.s8.bf16 %v247
    %v278 = vunpack.c.l.s8.bf16 %v248
    %v279 = vunpack.c.h.s8.bf16 %v247
    %v280 = vunpack.c.h.s8.bf16 %v248
    %v281 = vld [vmem:[#allocation2] sm:$0xff]
    %v282 = vld [vmem:[#allocation2 + $0x8] sm:$0xff]
    %v283 = vld [vmem:[#allocation2 + $0x10] sm:$0xff]
    %v284 = vld [vmem:[#allocation2 + $0x18] sm:$0xff]
    %v285 = vld [vmem:[#allocation2 + $0x20] sm:$0xff]
    %v286 = vld [vmem:[#allocation2 + $0x28] sm:$0xff]
    %v287 = vld [vmem:[#allocation2 + $0x30] sm:$0xff]
    %v288 = vld [vmem:[#allocation2 + $0x38] sm:$0xff]
    %v289 = vld [vmem:[#allocation2 + $0x40] sm:$0xff]
    %v290 = vld [vmem:[#allocation2 + $0x48] sm:$0xff]
    %v291 = vld [vmem:[#allocation2 + $0x50] sm:$0xff]
    %v292 = vld [vmem:[#allocation2 + $0x58] sm:$0xff]
    %v293 = vld [vmem:[#allocation2 + $0x60] sm:$0xff]
    %v294 = vld [vmem:[#allocation2 + $0x68] sm:$0xff]
    %v295 = vld [vmem:[#allocation2 + $0x70] sm:$0xff]
    %v296 = vld [vmem:[#allocation2 + $0x78] sm:$0xff]
    %v297 = vld [vmem:[#allocation2 + $0x80] sm:$0xff]
    %v298 = vld [vmem:[#allocation2 + $0x88] sm:$0xff]
    %v299 = vld [vmem:[#allocation2 + $0x90] sm:$0xff]
    %v300 = vld [vmem:[#allocation2 + $0x98] sm:$0xff]
    %v301 = vld [vmem:[#allocation2 + $0xa0] sm:$0xff]
    %v302 = vld [vmem:[#allocation2 + $0xa8] sm:$0xff]
    %v303 = vld [vmem:[#allocation2 + $0xb0] sm:$0xff]
    %v304 = vld [vmem:[#allocation2 + $0xb8] sm:$0xff]
    %v305 = vld [vmem:[#allocation2 + $0xc0] sm:$0xff]
    %v306 = vld [vmem:[#allocation2 + $0xc8] sm:$0xff]
    %v307 = vld [vmem:[#allocation2 + $0xd0] sm:$0xff]
    %v308 = vld [vmem:[#allocation2 + $0xd8] sm:$0xff]
    %v309 = vld [vmem:[#allocation2 + $0xe0] sm:$0xff]
    %v310 = vld [vmem:[#allocation2 + $0xe8] sm:$0xff]
    %v311 = vld [vmem:[#allocation2 + $0xf0] sm:$0xff]
    %v312 = vld [vmem:[#allocation2 + $0xf8] sm:$0xff]
    %v313 = vld [vmem:[%s1] sm:$0xf]
    %v314 = vld [vmem:[%s1 + $0x4] sm:$0xf]
    %v315 = vld [vmem:[%s1 + $0x8] sm:$0xf]
    %v316 = vld [vmem:[%s1 + $0xc] sm:$0xf]
    %v317 = vld [vmem:[%s1 + $0x10] sm:$0xf]
    %v318 = vld [vmem:[%s1 + $0x14] sm:$0xf]
    %v319 = vld [vmem:[%s1 + $0x18] sm:$0xf]
    %v320 = vld [vmem:[%s1 + $0x1c] sm:$0xf]
    %v321 = vld [vmem:[%s1 + $0x20] sm:$0xf]
    %v322 = vld [vmem:[%s1 + $0x24] sm:$0xf]
    %v323 = vld [vmem:[%s1 + $0x28] sm:$0xf]
    %v324 = vld [vmem:[%s1 + $0x2c] sm:$0xf]
    %v325 = vld [vmem:[%s1 + $0x30] sm:$0xf]
    %v326 = vld [vmem:[%s1 + $0x34] sm:$0xf]
    %v327 = vld [vmem:[%s1 + $0x38] sm:$0xf]
    %v328 = vld [vmem:[%s1 + $0x3c] sm:$0xf]
    %v329 = vld [vmem:[%s1 + $0x40] sm:$0xf]
    %v330 = vld [vmem:[%s1 + $0x44] sm:$0xf]
    %v331 = vld [vmem:[%s1 + $0x48] sm:$0xf]
    %v332 = vld [vmem:[%s1 + $0x4c] sm:$0xf]
    %v333 = vld [vmem:[%s1 + $0x50] sm:$0xf]
    %v334 = vld [vmem:[%s1 + $0x54] sm:$0xf]
    %v335 = vld [vmem:[%s1 + $0x58] sm:$0xf]
    %v336 = vld [vmem:[%s1 + $0x5c] sm:$0xf]
    %v337 = vld [vmem:[%s1 + $0x60] sm:$0xf]
    %v338 = vld [vmem:[%s1 + $0x64] sm:$0xf]
    %v339 = vld [vmem:[%s1 + $0x68] sm:$0xf]
    %v340 = vld [vmem:[%s1 + $0x6c] sm:$0xf]
    %v341 = vld [vmem:[%s1 + $0x70] sm:$0xf]
    %v342 = vld [vmem:[%s1 + $0x74] sm:$0xf]
    %v343 = vld [vmem:[%s1 + $0x78] sm:$0xf]
    %v344 = vld [vmem:[%s1 + $0x7c] sm:$0xf]
    %v377 = vunpack.c.l.b16 %v313
    %v378 = vunpack.c.l.b16 %v314
    %v379 = vunpack.c.l.b16 %v315
    %v380 = vunpack.c.l.b16 %v316
    %v381 = vunpack.c.l.b16 %v317
    %v382 = vunpack.c.l.b16 %v318
    %v383 = vunpack.c.l.b16 %v319
    %v384 = vunpack.c.l.b16 %v320
    %v385 = vunpack.c.l.b16 %v321
    %v386 = vunpack.c.l.b16 %v322
    %v387 = vunpack.c.l.b16 %v323
    %v388 = vunpack.c.l.b16 %v324
    %v389 = vunpack.c.l.b16 %v325
    %v390 = vunpack.c.l.b16 %v326
    %v391 = vunpack.c.l.b16 %v327
    %v392 = vunpack.c.l.b16 %v328
    %v393 = vunpack.c.l.b16 %v329
    %v394 = vunpack.c.l.b16 %v330
    %v395 = vunpack.c.l.b16 %v331
    %v396 = vunpack.c.l.b16 %v332
    %v397 = vunpack.c.l.b16 %v333
    %v398 = vunpack.c.l.b16 %v334
    %v399 = vunpack.c.l.b16 %v335
    %v400 = vunpack.c.l.b16 %v336
    %v401 = vunpack.c.l.b16 %v337
    %v402 = vunpack.c.l.b16 %v338
    %v403 = vunpack.c.l.b16 %v339
    %v404 = vunpack.c.l.b16 %v340
    %v405 = vunpack.c.l.b16 %v341
    %v406 = vunpack.c.l.b16 %v342
    %v407 = vunpack.c.l.b16 %v343
    %v408 = vunpack.c.l.b16 %v344
    %v409 = vpack.c.b16 %v378, %v377
    %v410 = vpack.c.b16 %v380, %v379
    %v411 = vpack.c.b16 %v382, %v381
    %v412 = vpack.c.b16 %v384, %v383
    %v413 = vpack.c.b16 %v386, %v385
    %v414 = vpack.c.b16 %v388, %v387
    %v415 = vpack.c.b16 %v390, %v389
    %v416 = vpack.c.b16 %v392, %v391
    %v417 = vpack.c.b16 %v394, %v393
    %v418 = vpack.c.b16 %v396, %v395
    %v419 = vpack.c.b16 %v398, %v397
    %v420 = vpack.c.b16 %v400, %v399
    %v421 = vpack.c.b16 %v402, %v401
    %v422 = vpack.c.b16 %v404, %v403
    %v423 = vpack.c.b16 %v406, %v405
    %v424 = vpack.c.b16 %v408, %v407
    %441 = vmatprep.subr.bf16.mxu0 0
    %442 = vmatpush1.bf16.msra.mxu0 %v409
    %443 = vmatprep.subr.bf16.mxu0 0
    %444 = vmatpush1.bf16.msra.mxu0 %v410
    %445 = vmatprep.subr.bf16.mxu0 0
    %446 = vmatpush1.bf16.msra.mxu0 %v411
    %447 = vmatprep.subr.bf16.mxu0 0
    %448 = vmatpush1.bf16.msra.mxu0 %v412
    %449 = vmatprep.subr.bf16.mxu0 0
    %450 = vmatpush1.bf16.msra.mxu0 %v413
    %451 = vmatprep.subr.bf16.mxu0 0
    %452 = vmatpush1.bf16.msra.mxu0 %v414
    %453 = vmatprep.subr.bf16.mxu0 0
    %454 = vmatpush1.bf16.msra.mxu0 %v415
    %455 = vmatprep.subr.bf16.mxu0 0
    %456 = vmatpush1.bf16.msra.mxu0 %v416
    %457 = vmatprep.subr.bf16.mxu0 0
    %458 = vmatpush1.bf16.msra.mxu0 %v417
    %459 = vmatprep.subr.bf16.mxu0 0
    %460 = vmatpush1.bf16.msra.mxu0 %v418
    %461 = vmatprep.subr.bf16.mxu0 0
    %462 = vmatpush1.bf16.msra.mxu0 %v419
    %463 = vmatprep.subr.bf16.mxu0 0
    %464 = vmatpush1.bf16.msra.mxu0 %v420
    %465 = vmatprep.subr.bf16.mxu0 0
    %466 = vmatpush1.bf16.msra.mxu0 %v421
    %467 = vmatprep.subr.bf16.mxu0 0
    %468 = vmatpush1.bf16.msra.mxu0 %v422
    %469 = vmatprep.subr.bf16.mxu0 0
    %470 = vmatpush1.bf16.msra.mxu0 %v423
    %471 = vmatprep.subr.bf16.mxu0 0
    %472 = vmatpush1.bf16.msra.mxu0 %v424
    %473 = vmatprep.mubr.bf16.mxu0 %v250
    %474 = vmatmul.mubr.bf16.gmra.mrb[0].mxu0 %v249
    %v475 = vpop.f32.mrb[0].mxu0
    %v476 = vadd.f32 0.0, %v475
    %v477 = vpop.f32.mrb[0].mxu0
    %v478 = vpop.f32.mrb[0].mxu0
    %v479 = vadd.f32 0.0, %v478
    %v480 = vpop.f32.mrb[0].mxu0
    %481 = vmatprep.mubr.bf16.mxu0 %v252
    %482 = vmatmul.mubr.bf16.gmra.mrb[0].mxu0 %v251
    %v483 = vpop.f32.mrb[0].mxu0
    %v484 = vadd.f32 0.0, %v483
    %v485 = vpop.f32.mrb[0].mxu0
    %v486 = vpop.f32.mrb[0].mxu0
    %v487 = vadd.f32 0.0, %v486
    %v488 = vpop.f32.mrb[0].mxu0
    %489 = vmatprep.mubr.bf16.mxu0 %v254
    %490 = vmatmul.mubr.bf16.gmra.mrb[0].mxu0 %v253
    %v491 = vpop.f32.mrb[0].mxu0
    %v492 = vadd.f32 0.0, %v491
    %v493 = vpop.f32.mrb[0].mxu0
    %v494 = vpop.f32.mrb[0].mxu0
    %v495 = vadd.f32 0.0, %v494
    %v496 = vpop.f32.mrb[0].mxu0
    %497 = vmatprep.mubr.bf16.mxu0 %v256
    %498 = vmatmul.mubr.bf16.gmra.mrb[0].mxu0 %v255
    %v499 = vpop.f32.mrb[0].mxu0
    %v500 = vadd.f32 0.0, %v499
    %v501 = vpop.f32.mrb[0].mxu0
    %v502 = vpop.f32.mrb[0].mxu0
    %v503 = vadd.f32 0.0, %v502
    %v504 = vpop.f32.mrb[0].mxu0
    %505 = vmatprep.mubr.bf16.mxu0 %v258
    %506 = vmatmul.mubr.bf16.gmra.mrb[0].mxu0 %v257
    %v507 = vpop.f32.mrb[0].mxu0
    %v508 = vadd.f32 0.0, %v507
    %v509 = vpop.f32.mrb[0].mxu0
    %v510 = vpop.f32.mrb[0].mxu0
    %v511 = vadd.f32 0.0, %v510
    %v512 = vpop.f32.mrb[0].mxu0
    %513 = vmatprep.mubr.bf16.mxu0 %v260
    %514 = vmatmul.mubr.bf16.gmra.mrb[0].mxu0 %v259
    %v515 = vpop.f32.mrb[0].mxu0
    %v516 = vadd.f32 0.0, %v515
    %v517 = vpop.f32.mrb[0].mxu0
    %v518 = vpop.f32.mrb[0].mxu0
    %v519 = vadd.f32 0.0, %v518
    %v520 = vpop.f32.mrb[0].mxu0
    %521 = vmatprep.mubr.bf16.mxu0 %v262
    %522 = vmatmul.mubr.bf16.gmra.mrb[0].mxu0 %v261
    %v523 = vpop.f32.mrb[0].mxu0
    %v524 = vadd.f32 0.0, %v523
    %v525 = vpop.f32.mrb[0].mxu0
    %v526 = vpop.f32.mrb[0].mxu0
    %v527 = vadd.f32 0.0, %v526
    %v528 = vpop.f32.mrb[0].mxu0
    %529 = vmatprep.mubr.bf16.mxu0 %v264
    %530 = vmatmul.mubr.bf16.gmra.mrb[0].mxu0 %v263
    %v531 = vpop.f32.mrb[0].mxu0
    %v532 = vadd.f32 0.0, %v531
    %v533 = vpop.f32.mrb[0].mxu0
    %v534 = vpop.f32.mrb[0].mxu0
    %v535 = vadd.f32 0.0, %v534
    %v536 = vpop.f32.mrb[0].mxu0
    %537 = vmatprep.mubr.bf16.mxu0 %v266
    %538 = vmatmul.mubr.bf16.gmra.mrb[0].mxu0 %v265
    %v539 = vpop.f32.mrb[0].mxu0
    %v540 = vadd.f32 0.0, %v539
    %v541 = vpop.f32.mrb[0].mxu0
    %v542 = vpop.f32.mrb[0].mxu0
    %v543 = vadd.f32 0.0, %v542
    %v544 = vpop.f32.mrb[0].mxu0
    %545 = vmatprep.mubr.bf16.mxu0 %v268
    %546 = vmatmul.mubr.bf16.gmra.mrb[0].mxu0 %v267
    %v547 = vpop.f32.mrb[0].mxu0
    %v548 = vadd.f32 0.0, %v547
    %v549 = vpop.f32.mrb[0].mxu0
    %v550 = vpop.f32.mrb[0].mxu0
    %v551 = vadd.f32 0.0, %v550
    %v552 = vpop.f32.mrb[0].mxu0
    %553 = vmatprep.mubr.bf16.mxu0 %v270
    %554 = vmatmul.mubr.bf16.gmra.mrb[0].mxu0 %v269
    %v555 = vpop.f32.mrb[0].mxu0
    %v556 = vadd.f32 0.0, %v555
    %v557 = vpop.f32.mrb[0].mxu0
    %v558 = vpop.f32.mrb[0].mxu0
    %v559 = vadd.f32 0.0, %v558
    %v560 = vpop.f32.mrb[0].mxu0
    %561 = vmatprep.mubr.bf16.mxu0 %v272
    %562 = vmatmul.mubr.bf16.gmra.mrb[0].mxu0 %v271
    %v563 = vpop.f32.mrb[0].mxu0
    %v564 = vadd.f32 0.0, %v563
    %v565 = vpop.f32.mrb[0].mxu0
    %v566 = vpop.f32.mrb[0].mxu0
    %v567 = vadd.f32 0.0, %v566
    %v568 = vpop.f32.mrb[0].mxu0
    %569 = vmatprep.mubr.bf16.mxu0 %v274
    %570 = vmatmul.mubr.bf16.gmra.mrb[0].mxu0 %v273
    %v571 = vpop.f32.mrb[0].mxu0
    %v572 = vadd.f32 0.0, %v571
    %v573 = vpop.f32.mrb[0].mxu0
    %v574 = vpop.f32.mrb[0].mxu0
    %v575 = vadd.f32 0.0, %v574
    %v576 = vpop.f32.mrb[0].mxu0
    %577 = vmatprep.mubr.bf16.mxu0 %v276
    %578 = vmatmul.mubr.bf16.gmra.mrb[0].mxu0 %v275
    %v579 = vpop.f32.mrb[0].mxu0
    %v580 = vadd.f32 0.0, %v579
    %v581 = vpop.f32.mrb[0].mxu0
    %v582 = vpop.f32.mrb[0].mxu0
    %v583 = vadd.f32 0.0, %v582
    %v584 = vpop.f32.mrb[0].mxu0
    %585 = vmatprep.mubr.bf16.mxu0 %v278
    %586 = vmatmul.mubr.bf16.gmra.mrb[0].mxu0 %v277
    %v587 = vpop.f32.mrb[0].mxu0
    %v588 = vadd.f32 0.0, %v587
    %v589 = vpop.f32.mrb[0].mxu0
    %v590 = vpop.f32.mrb[0].mxu0
    %v591 = vadd.f32 0.0, %v590
    %v592 = vpop.f32.mrb[0].mxu0
    %593 = vmatprep.mubr.bf16.mxu0 %v280
    %594 = vmatmul.mubr.bf16.gmra.mrb[0].mxu0 %v279
    %v595 = vpop.f32.mrb[0].mxu0
    %v596 = vadd.f32 0.0, %v595
    %v597 = vpop.f32.mrb[0].mxu0
    %v598 = vpop.f32.mrb[0].mxu0
    %v599 = vadd.f32 0.0, %v598
    %v600 = vpop.f32.mrb[0].mxu0
    %601 = vdwg.mxu0
    %v602 = vadd.f32 %v281, %v476
    %v603 = vadd.f32 %v282, %v479
    %v604 = vadd.f32 %v283, %v484
    %v605 = vadd.f32 %v284, %v487
    %v606 = vadd.f32 %v285, %v492
    %v607 = vadd.f32 %v286, %v495
    %v608 = vadd.f32 %v287, %v500
    %v609 = vadd.f32 %v288, %v503
    %v610 = vadd.f32 %v289, %v508
    %v611 = vadd.f32 %v290, %v511
    %v612 = vadd.f32 %v291, %v516
    %v613 = vadd.f32 %v292, %v519
    %v614 = vadd.f32 %v293, %v524
    %v615 = vadd.f32 %v294, %v527
    %v616 = vadd.f32 %v295, %v532
    %v617 = vadd.f32 %v296, %v535
    %v618 = vadd.f32 %v297, %v540
    %v619 = vadd.f32 %v298, %v543
    %v620 = vadd.f32 %v299, %v548
    %v621 = vadd.f32 %v300, %v551
    %v622 = vadd.f32 %v301, %v556
    %v623 = vadd.f32 %v302, %v559
    %v624 = vadd.f32 %v303, %v564
    %v625 = vadd.f32 %v304, %v567
    %v626 = vadd.f32 %v305, %v572
    %v627 = vadd.f32 %v306, %v575
    %v628 = vadd.f32 %v307, %v580
    %v629 = vadd.f32 %v308, %v583
    %v630 = vadd.f32 %v309, %v588
    %v631 = vadd.f32 %v310, %v591
    %v632 = vadd.f32 %v311, %v596
    %v633 = vadd.f32 %v312, %v599
    %634 = vst [vmem:[#allocation2] sm:$0xff] %v602
    %635 = vst [vmem:[#allocation2 + $0x8] sm:$0xff] %v603
    %636 = vst [vmem:[#allocation2 + $0x10] sm:$0xff] %v604
    %637 = vst [vmem:[#allocation2 + $0x18] sm:$0xff] %v605
    %638 = vst [vmem:[#allocation2 + $0x20] sm:$0xff] %v606
    %639 = vst [vmem:[#allocation2 + $0x28] sm:$0xff] %v607
    %640 = vst [vmem:[#allocation2 + $0x30] sm:$0xff] %v608
    %641 = vst [vmem:[#allocation2 + $0x38] sm:$0xff] %v609
    %642 = vst [vmem:[#allocation2 + $0x40] sm:$0xff] %v610
    %643 = vst [vmem:[#allocation2 + $0x48] sm:$0xff] %v611
    %644 = vst [vmem:[#allocation2 + $0x50] sm:$0xff] %v612
    %645 = vst [vmem:[#allocation2 + $0x58] sm:$0xff] %v613
    %646 = vst [vmem:[#allocation2 + $0x60] sm:$0xff] %v614
    %647 = vst [vmem:[#allocation2 + $0x68] sm:$0xff] %v615
    %648 = vst [vmem:[#allocation2 + $0x70] sm:$0xff] %v616
    %649 = vst [vmem:[#allocation2 + $0x78] sm:$0xff] %v617
    %650 = vst [vmem:[#allocation2 + $0x80] sm:$0xff] %v618
    %651 = vst [vmem:[#allocation2 + $0x88] sm:$0xff] %v619
    %652 = vst [vmem:[#allocation2 + $0x90] sm:$0xff] %v620
    %653 = vst [vmem:[#allocation2 + $0x98] sm:$0xff] %v621
    %654 = vst [vmem:[#allocation2 + $0xa0] sm:$0xff] %v622
    %655 = vst [vmem:[#allocation2 + $0xa8] sm:$0xff] %v623
    %656 = vst [vmem:[#allocation2 + $0xb0] sm:$0xff] %v624
    %657 = vst [vmem:[#allocation2 + $0xb8] sm:$0xff] %v625
    %658 = vst [vmem:[#allocation2 + $0xc0] sm:$0xff] %v626
    %659 = vst [vmem:[#allocation2 + $0xc8] sm:$0xff] %v627
    %660 = vst [vmem:[#allocation2 + $0xd0] sm:$0xff] %v628
    %661 = vst [vmem:[#allocation2 + $0xd8] sm:$0xff] %v629
    %662 = vst [vmem:[#allocation2 + $0xe0] sm:$0xff] %v630
    %663 = vst [vmem:[#allocation2 + $0xe8] sm:$0xff] %v631
    %664 = vst [vmem:[#allocation2 + $0xf0] sm:$0xff] %v632
    %665 = vst [vmem:[#allocation2 + $0xf8] sm:$0xff] %v633
    // Predicated region
    $region38: #{tpu_custom_call.1} parent=1 // pred_check
      %p666 = pneg %p53
    $region39: #{tpu_custom_call.1} parent=1 // pred_check_branch
      %668 = sbr.rel (%p666) target = $region41
    $region40: #{tpu_custom_call.1} parent=1 // pred_region
      %v669 = vld [vmem:[#allocation2] sm:$0xff]
      %v670 = vld [vmem:[#allocation2 + $0x8] sm:$0xff]
      %v671 = vld [vmem:[#allocation2 + $0x10] sm:$0xff]
      %v672 = vld [vmem:[#allocation2 + $0x18] sm:$0xff]
      %v673 = vld [vmem:[#allocation2 + $0x20] sm:$0xff]
      %v674 = vld [vmem:[#allocation2 + $0x28] sm:$0xff]
      %v675 = vld [vmem:[#allocation2 + $0x30] sm:$0xff]
      %v676 = vld [vmem:[#allocation2 + $0x38] sm:$0xff]
      %v677 = vld [vmem:[#allocation2 + $0x40] sm:$0xff]
      %v678 = vld [vmem:[#allocation2 + $0x48] sm:$0xff]
      %v679 = vld [vmem:[#allocation2 + $0x50] sm:$0xff]
      %v680 = vld [vmem:[#allocation2 + $0x58] sm:$0xff]
      %v681 = vld [vmem:[#allocation2 + $0x60] sm:$0xff]
      %v682 = vld [vmem:[#allocation2 + $0x68] sm:$0xff]
      %v683 = vld [vmem:[#allocation2 + $0x70] sm:$0xff]
      %v684 = vld [vmem:[#allocation2 + $0x78] sm:$0xff]
      %v685 = vld [vmem:[#allocation2 + $0x80] sm:$0xff]
      %v686 = vld [vmem:[#allocation2 + $0x88] sm:$0xff]
      %v687 = vld [vmem:[#allocation2 + $0x90] sm:$0xff]
      %v688 = vld [vmem:[#allocation2 + $0x98] sm:$0xff]
      %v689 = vld [vmem:[#allocation2 + $0xa0] sm:$0xff]
      %v690 = vld [vmem:[#allocation2 + $0xa8] sm:$0xff]
      %v691 = vld [vmem:[#allocation2 + $0xb0] sm:$0xff]
      %v692 = vld [vmem:[#allocation2 + $0xb8] sm:$0xff]
      %v693 = vld [vmem:[#allocation2 + $0xc0] sm:$0xff]
      %v694 = vld [vmem:[#allocation2 + $0xc8] sm:$0xff]
      %v695 = vld [vmem:[#allocation2 + $0xd0] sm:$0xff]
      %v696 = vld [vmem:[#allocation2 + $0xd8] sm:$0xff]
      %v697 = vld [vmem:[#allocation2 + $0xe0] sm:$0xff]
      %v698 = vld [vmem:[#allocation2 + $0xe8] sm:$0xff]
      %v699 = vld [vmem:[#allocation2 + $0xf0] sm:$0xff]
      %v700 = vld [vmem:[#allocation2 + $0xf8] sm:$0xff]
      %v701 = vld [vmem:[%s3] sm:$0xff]
      %v702 = vld [vmem:[%s3 + $0x8] sm:$0xff]
      %v703 = vld [vmem:[%s3 + $0x10] sm:$0xff]
      %v704 = vld [vmem:[%s3 + $0x18] sm:$0xff]
      %v705 = vld [vmem:[%s3 + $0x20] sm:$0xff]
      %v706 = vld [vmem:[%s3 + $0x28] sm:$0xff]
      %v707 = vld [vmem:[%s3 + $0x30] sm:$0xff]
      %v708 = vld [vmem:[%s3 + $0x38] sm:$0xff]
      %v709 = vld [vmem:[%s3 + $0x40] sm:$0xff]
      %v710 = vld [vmem:[%s3 + $0x48] sm:$0xff]
      %v711 = vld [vmem:[%s3 + $0x50] sm:$0xff]
      %v712 = vld [vmem:[%s3 + $0x58] sm:$0xff]
      %v713 = vld [vmem:[%s3 + $0x60] sm:$0xff]
      %v714 = vld [vmem:[%s3 + $0x68] sm:$0xff]
      %v715 = vld [vmem:[%s3 + $0x70] sm:$0xff]
      %v716 = vld [vmem:[%s3 + $0x78] sm:$0xff]
      %v717 = vld [vmem:[%s3 + $0x80] sm:$0xff]
      %v718 = vld [vmem:[%s3 + $0x88] sm:$0xff]
      %v719 = vld [vmem:[%s3 + $0x90] sm:$0xff]
      %v720 = vld [vmem:[%s3 + $0x98] sm:$0xff]
      %v721 = vld [vmem:[%s3 + $0xa0] sm:$0xff]
      %v722 = vld [vmem:[%s3 + $0xa8] sm:$0xff]
      %v723 = vld [vmem:[%s3 + $0xb0] sm:$0xff]
      %v724 = vld [vmem:[%s3 + $0xb8] sm:$0xff]
      %v725 = vld [vmem:[%s3 + $0xc0] sm:$0xff]
      %v726 = vld [vmem:[%s3 + $0xc8] sm:$0xff]
      %v727 = vld [vmem:[%s3 + $0xd0] sm:$0xff]
      %v728 = vld [vmem:[%s3 + $0xd8] sm:$0xff]
      %v729 = vld [vmem:[%s3 + $0xe0] sm:$0xff]
      %v730 = vld [vmem:[%s3 + $0xe8] sm:$0xff]
      %v731 = vld [vmem:[%s3 + $0xf0] sm:$0xff]
      %v732 = vld [vmem:[%s3 + $0xf8] sm:$0xff]
      %734 = vset.pattern.permute.xlu0 0
      %735 = vperm.xlu0 %734, %v701
      %v736 = vpop.permute.xlu0 %735
      %739 = vset.pattern.permute.xlu0 0
      %740 = vperm.xlu0 %739, %v702
      %v741 = vpop.permute.xlu0 %740
      %744 = vset.pattern.permute.xlu0 0
      %745 = vperm.xlu0 %744, %v703
      %v746 = vpop.permute.xlu0 %745
      %749 = vset.pattern.permute.xlu0 0
      %750 = vperm.xlu0 %749, %v704
      %v751 = vpop.permute.xlu0 %750
      %754 = vset.pattern.permute.xlu0 0
      %755 = vperm.xlu0 %754, %v705
      %v756 = vpop.permute.xlu0 %755
      %759 = vset.pattern.permute.xlu0 0
      %760 = vperm.xlu0 %759, %v706
      %v761 = vpop.permute.xlu0 %760
      %764 = vset.pattern.permute.xlu0 0
      %765 = vperm.xlu0 %764, %v707
      %v766 = vpop.permute.xlu0 %765
      %769 = vset.pattern.permute.xlu0 0
      %770 = vperm.xlu0 %769, %v708
      %v771 = vpop.permute.xlu0 %770
      %774 = vset.pattern.permute.xlu0 0
      %775 = vperm.xlu0 %774, %v709
      %v776 = vpop.permute.xlu0 %775
      %779 = vset.pattern.permute.xlu0 0
      %780 = vperm.xlu0 %779, %v710
      %v781 = vpop.permute.xlu0 %780
      %784 = vset.pattern.permute.xlu0 0
      %785 = vperm.xlu0 %784, %v711
      %v786 = vpop.permute.xlu0 %785
      %789 = vset.pattern.permute.xlu0 0
      %790 = vperm.xlu0 %789, %v712
      %v791 = vpop.permute.xlu0 %790
      %794 = vset.pattern.permute.xlu0 0
      %795 = vperm.xlu0 %794, %v713
      %v796 = vpop.permute.xlu0 %795
      %799 = vset.pattern.permute.xlu0 0
      %800 = vperm.xlu0 %799, %v714
      %v801 = vpop.permute.xlu0 %800
      %804 = vset.pattern.permute.xlu0 0
      %805 = vperm.xlu0 %804, %v715
      %v806 = vpop.permute.xlu0 %805
      %809 = vset.pattern.permute.xlu0 0
      %810 = vperm.xlu0 %809, %v716
      %v811 = vpop.permute.xlu0 %810
      %814 = vset.pattern.permute.xlu0 0
      %815 = vperm.xlu0 %814, %v717
      %v816 = vpop.permute.xlu0 %815
      %819 = vset.pattern.permute.xlu0 0
      %820 = vperm.xlu0 %819, %v718
      %v821 = vpop.permute.xlu0 %820
      %824 = vset.pattern.permute.xlu0 0
      %825 = vperm.xlu0 %824, %v719
      %v826 = vpop.permute.xlu0 %825
      %829 = vset.pattern.permute.xlu0 0
      %830 = vperm.xlu0 %829, %v720
      %v831 = vpop.permute.xlu0 %830
      %834 = vset.pattern.permute.xlu0 0
      %835 = vperm.xlu0 %834, %v721
      %v836 = vpop.permute.xlu0 %835
      %839 = vset.pattern.permute.xlu0 0
      %840 = vperm.xlu0 %839, %v722
      %v841 = vpop.permute.xlu0 %840
      %844 = vset.pattern.permute.xlu0 0
      %845 = vperm.xlu0 %844, %v723
      %v846 = vpop.permute.xlu0 %845
      %849 = vset.pattern.permute.xlu0 0
      %850 = vperm.xlu0 %849, %v724
      %v851 = vpop.permute.xlu0 %850
      %854 = vset.pattern.permute.xlu0 0
      %855 = vperm.xlu0 %854, %v725
      %v856 = vpop.permute.xlu0 %855
      %859 = vset.pattern.permute.xlu0 0
      %860 = vperm.xlu0 %859, %v726
      %v861 = vpop.permute.xlu0 %860
      %864 = vset.pattern.permute.xlu0 0
      %865 = vperm.xlu0 %864, %v727
      %v866 = vpop.permute.xlu0 %865
      %869 = vset.pattern.permute.xlu0 0
      %870 = vperm.xlu0 %869, %v728
      %v871 = vpop.permute.xlu0 %870
      %874 = vset.pattern.permute.xlu0 0
      %875 = vperm.xlu0 %874, %v729
      %v876 = vpop.permute.xlu0 %875
      %879 = vset.pattern.permute.xlu0 0
      %880 = vperm.xlu0 %879, %v730
      %v881 = vpop.permute.xlu0 %880
      %884 = vset.pattern.permute.xlu0 0
      %885 = vperm.xlu0 %884, %v731
      %v886 = vpop.permute.xlu0 %885
      %889 = vset.pattern.permute.xlu0 0
      %890 = vperm.xlu0 %889, %v732
      %v891 = vpop.permute.xlu0 %890
      %v893 = vmul.f32 %v669, %v736
      %v894 = vmul.f32 %v670, %v741
      %v895 = vmul.f32 %v671, %v746
      %v896 = vmul.f32 %v672, %v751
      %v897 = vmul.f32 %v673, %v756
      %v898 = vmul.f32 %v674, %v761
      %v899 = vmul.f32 %v675, %v766
      %v900 = vmul.f32 %v676, %v771
      %v901 = vmul.f32 %v677, %v776
      %v902 = vmul.f32 %v678, %v781
      %v903 = vmul.f32 %v679, %v786
      %v904 = vmul.f32 %v680, %v791
      %v905 = vmul.f32 %v681, %v796
      %v906 = vmul.f32 %v682, %v801
      %v907 = vmul.f32 %v683, %v806
      %v908 = vmul.f32 %v684, %v811
      %v909 = vmul.f32 %v685, %v816
      %v910 = vmul.f32 %v686, %v821
      %v911 = vmul.f32 %v687, %v826
      %v912 = vmul.f32 %v688, %v831
      %v913 = vmul.f32 %v689, %v836
      %v914 = vmul.f32 %v690, %v841
      %v915 = vmul.f32 %v691, %v846
      %v916 = vmul.f32 %v692, %v851
      %v917 = vmul.f32 %v693, %v856
      %v918 = vmul.f32 %v694, %v861
      %v919 = vmul.f32 %v695, %v866
      %v920 = vmul.f32 %v696, %v871
      %v921 = vmul.f32 %v697, %v876
      %v922 = vmul.f32 %v698, %v881
      %v923 = vmul.f32 %v699, %v886
      %v924 = vmul.f32 %v700, %v891
      %v925 = vpack.c.bf16 %v894, %v893
      %v926 = vpack.c.bf16 %v896, %v895
      %v927 = vpack.c.bf16 %v898, %v897
      %v928 = vpack.c.bf16 %v900, %v899
      %v929 = vpack.c.bf16 %v902, %v901
      %v930 = vpack.c.bf16 %v904, %v903
      %v931 = vpack.c.bf16 %v906, %v905
      %v932 = vpack.c.bf16 %v908, %v907
      %v933 = vpack.c.bf16 %v910, %v909
      %v934 = vpack.c.bf16 %v912, %v911
      %v935 = vpack.c.bf16 %v914, %v913
      %v936 = vpack.c.bf16 %v916, %v915
      %v937 = vpack.c.bf16 %v918, %v917
      %v938 = vpack.c.bf16 %v920, %v919
      %v939 = vpack.c.bf16 %v922, %v921
      %v940 = vpack.c.bf16 %v924, %v923
      %941 = vst [vmem:[#allocation3] sm:$0xff] %v925
      %942 = vst [vmem:[#allocation3 + $0x10] sm:$0xff] %v926
      %943 = vst [vmem:[#allocation3 + $0x20] sm:$0xff] %v927
      %944 = vst [vmem:[#allocation3 + $0x30] sm:$0xff] %v928
      %945 = vst [vmem:[#allocation3 + $0x40] sm:$0xff] %v929
      %946 = vst [vmem:[#allocation3 + $0x50] sm:$0xff] %v930
      %947 = vst [vmem:[#allocation3 + $0x60] sm:$0xff] %v931
      %948 = vst [vmem:[#allocation3 + $0x70] sm:$0xff] %v932
      %949 = vst [vmem:[#allocation3 + $0x80] sm:$0xff] %v933
      %950 = vst [vmem:[#allocation3 + $0x90] sm:$0xff] %v934
      %951 = vst [vmem:[#allocation3 + $0xa0] sm:$0xff] %v935
      %952 = vst [vmem:[#allocation3 + $0xb0] sm:$0xff] %v936
      %953 = vst [vmem:[#allocation3 + $0xc0] sm:$0xff] %v937
      %954 = vst [vmem:[#allocation3 + $0xd0] sm:$0xff] %v938
      %955 = vst [vmem:[#allocation3 + $0xe0] sm:$0xff] %v939
      %956 = vst [vmem:[#allocation3 + $0xf0] sm:$0xff] %v940
      %v957 = vld [vmem:[#allocation3] sm:$0xff]
      %v958 = vld [vmem:[#allocation3 + $0x8] sm:$0xff]
      %v959 = vld [vmem:[#allocation3 + $0x10] sm:$0xff]
      %v960 = vld [vmem:[#allocation3 + $0x18] sm:$0xff]
      %v961 = vld [vmem:[#allocation3 + $0x20] sm:$0xff]
      %v962 = vld [vmem:[#allocation3 + $0x28] sm:$0xff]
      %v963 = vld [vmem:[#allocation3 + $0x30] sm:$0xff]
      %v964 = vld [vmem:[#allocation3 + $0x38] sm:$0xff]
      %v965 = vld [vmem:[#allocation3 + $0x40] sm:$0xff]
      %v966 = vld [vmem:[#allocation3 + $0x48] sm:$0xff]
      %v967 = vld [vmem:[#allocation3 + $0x50] sm:$0xff]
      %v968 = vld [vmem:[#allocation3 + $0x58] sm:$0xff]
      %v969 = vld [vmem:[#allocation3 + $0x60] sm:$0xff]
      %v970 = vld [vmem:[#allocation3 + $0x68] sm:$0xff]
      %v971 = vld [vmem:[#allocation3 + $0x70] sm:$0xff]
      %v972 = vld [vmem:[#allocation3 + $0x78] sm:$0xff]
      %v973 = vld [vmem:[#allocation3 + $0x80] sm:$0xff]
      %v974 = vld [vmem:[#allocation3 + $0x88] sm:$0xff]
      %v975 = vld [vmem:[#allocation3 + $0x90] sm:$0xff]
      %v976 = vld [vmem:[#allocation3 + $0x98] sm:$0xff]
      %v977 = vld [vmem:[#allocation3 + $0xa0] sm:$0xff]
      %v978 = vld [vmem:[#allocation3 + $0xa8] sm:$0xff]
      %v979 = vld [vmem:[#allocation3 + $0xb0] sm:$0xff]
      %v980 = vld [vmem:[#allocation3 + $0xb8] sm:$0xff]
      %v981 = vld [vmem:[#allocation3 + $0xc0] sm:$0xff]
      %v982 = vld [vmem:[#allocation3 + $0xc8] sm:$0xff]
      %v983 = vld [vmem:[#allocation3 + $0xd0] sm:$0xff]
      %v984 = vld [vmem:[#allocation3 + $0xd8] sm:$0xff]
      %v985 = vld [vmem:[#allocation3 + $0xe0] sm:$0xff]
      %v986 = vld [vmem:[#allocation3 + $0xe8] sm:$0xff]
      %v987 = vld [vmem:[#allocation3 + $0xf0] sm:$0xff]
      %v988 = vld [vmem:[#allocation3 + $0xf8] sm:$0xff]
      %v989 = vld [vmem:[#allocation7] sm:$0xf]
      %v990 = vld [vmem:[#allocation7 + $0x4] sm:$0xf]
      %v991 = vld [vmem:[#allocation7 + $0x8] sm:$0xf]
      %v992 = vld [vmem:[#allocation7 + $0xc] sm:$0xf]
      %v993 = vld [vmem:[#allocation7 + $0x10] sm:$0xf]
      %v994 = vld [vmem:[#allocation7 + $0x14] sm:$0xf]
      %v995 = vld [vmem:[#allocation7 + $0x18] sm:$0xf]
      %v996 = vld [vmem:[#allocation7 + $0x1c] sm:$0xf]
      %v997 = vld [vmem:[#allocation7 + $0x20] sm:$0xf]
      %v998 = vld [vmem:[#allocation7 + $0x24] sm:$0xf]
      %v999 = vld [vmem:[#allocation7 + $0x28] sm:$0xf]
      %v1000 = vld [vmem:[#allocation7 + $0x2c] sm:$0xf]
      %v1001 = vld [vmem:[#allocation7 + $0x30] sm:$0xf]
      %v1002 = vld [vmem:[#allocation7 + $0x34] sm:$0xf]
      %v1003 = vld [vmem:[#allocation7 + $0x38] sm:$0xf]
      %v1004 = vld [vmem:[#allocation7 + $0x3c] sm:$0xf]
      %v1005 = vld [vmem:[#allocation7 + $0x40] sm:$0xf]
      %v1006 = vld [vmem:[#allocation7 + $0x44] sm:$0xf]
      %v1007 = vld [vmem:[#allocation7 + $0x48] sm:$0xf]
      %v1008 = vld [vmem:[#allocation7 + $0x4c] sm:$0xf]
      %v1009 = vld [vmem:[#allocation7 + $0x50] sm:$0xf]
      %v1010 = vld [vmem:[#allocation7 + $0x54] sm:$0xf]
      %v1011 = vld [vmem:[#allocation7 + $0x58] sm:$0xf]
      %v1012 = vld [vmem:[#allocation7 + $0x5c] sm:$0xf]
      %v1013 = vld [vmem:[#allocation7 + $0x60] sm:$0xf]
      %v1014 = vld [vmem:[#allocation7 + $0x64] sm:$0xf]
      %v1015 = vld [vmem:[#allocation7 + $0x68] sm:$0xf]
      %v1016 = vld [vmem:[#allocation7 + $0x6c] sm:$0xf]
      %v1017 = vld [vmem:[#allocation7 + $0x70] sm:$0xf]
      %v1018 = vld [vmem:[#allocation7 + $0x74] sm:$0xf]
      %v1019 = vld [vmem:[#allocation7 + $0x78] sm:$0xf]
      %v1020 = vld [vmem:[#allocation7 + $0x7c] sm:$0xf]
      %v1021 = vld [vmem:[%s5] sm:$0x1]
      %v1023 = vlaneseq
      %v1024 = vshrl.u32 %v1023, 7
      %v1025 = vsub.s32 0, %v1024
      %v1026 = vrot.slane %v1021, %v1025
      %v1060 = vunpack.c.l.b16 %v989
      %v1061 = vunpack.c.l.b16 %v990
      %v1062 = vunpack.c.l.b16 %v991
      %v1063 = vunpack.c.l.b16 %v992
      %v1064 = vunpack.c.l.b16 %v993
      %v1065 = vunpack.c.l.b16 %v994
      %v1066 = vunpack.c.l.b16 %v995
      %v1067 = vunpack.c.l.b16 %v996
      %v1068 = vunpack.c.l.b16 %v997
      %v1069 = vunpack.c.l.b16 %v998
      %v1070 = vunpack.c.l.b16 %v999
      %v1071 = vunpack.c.l.b16 %v1000
      %v1072 = vunpack.c.l.b16 %v1001
      %v1073 = vunpack.c.l.b16 %v1002
      %v1074 = vunpack.c.l.b16 %v1003
      %v1075 = vunpack.c.l.b16 %v1004
      %v1076 = vunpack.c.l.b16 %v1005
      %v1077 = vunpack.c.l.b16 %v1006
      %v1078 = vunpack.c.l.b16 %v1007
      %v1079 = vunpack.c.l.b16 %v1008
      %v1080 = vunpack.c.l.b16 %v1009
      %v1081 = vunpack.c.l.b16 %v1010
      %v1082 = vunpack.c.l.b16 %v1011
      %v1083 = vunpack.c.l.b16 %v1012
      %v1084 = vunpack.c.l.b16 %v1013
      %v1085 = vunpack.c.l.b16 %v1014
      %v1086 = vunpack.c.l.b16 %v1015
      %v1087 = vunpack.c.l.b16 %v1016
      %v1088 = vunpack.c.l.b16 %v1017
      %v1089 = vunpack.c.l.b16 %v1018
      %v1090 = vunpack.c.l.b16 %v1019
      %v1091 = vunpack.c.l.b16 %v1020
      %v1092 = vpack.c.b16 %v1061, %v1060
      %v1093 = vpack.c.b16 %v1063, %v1062
      %v1094 = vpack.c.b16 %v1065, %v1064
      %v1095 = vpack.c.b16 %v1067, %v1066
      %v1096 = vpack.c.b16 %v1069, %v1068
      %v1097 = vpack.c.b16 %v1071, %v1070
      %v1098 = vpack.c.b16 %v1073, %v1072
      %v1099 = vpack.c.b16 %v1075, %v1074
      %v1100 = vpack.c.b16 %v1077, %v1076
      %v1101 = vpack.c.b16 %v1079, %v1078
      %v1102 = vpack.c.b16 %v1081, %v1080
      %v1103 = vpack.c.b16 %v1083, %v1082
      %v1104 = vpack.c.b16 %v1085, %v1084
      %v1105 = vpack.c.b16 %v1087, %v1086
      %v1106 = vpack.c.b16 %v1089, %v1088
      %v1107 = vpack.c.b16 %v1091, %v1090
      %1124 = vmatprep.subr.bf16.mxu0 0
      %1125 = vmatpush1.bf16.msra.mxu0 %v1092
      %1126 = vmatprep.subr.bf16.mxu0 0
      %1127 = vmatpush1.bf16.msra.mxu0 %v1093
      %1128 = vmatprep.subr.bf16.mxu0 0
      %1129 = vmatpush1.bf16.msra.mxu0 %v1094
      %1130 = vmatprep.subr.bf16.mxu0 0
      %1131 = vmatpush1.bf16.msra.mxu0 %v1095
      %1132 = vmatprep.subr.bf16.mxu0 0
      %1133 = vmatpush1.bf16.msra.mxu0 %v1096
      %1134 = vmatprep.subr.bf16.mxu0 0
      %1135 = vmatpush1.bf16.msra.mxu0 %v1097
      %1136 = vmatprep.subr.bf16.mxu0 0
      %1137 = vmatpush1.bf16.msra.mxu0 %v1098
      %1138 = vmatprep.subr.bf16.mxu0 0
      %1139 = vmatpush1.bf16.msra.mxu0 %v1099
      %1140 = vmatprep.subr.bf16.mxu0 0
      %1141 = vmatpush1.bf16.msra.mxu0 %v1100
      %1142 = vmatprep.subr.bf16.mxu0 0
      %1143 = vmatpush1.bf16.msra.mxu0 %v1101
      %1144 = vmatprep.subr.bf16.mxu0 0
      %1145 = vmatpush1.bf16.msra.mxu0 %v1102
      %1146 = vmatprep.subr.bf16.mxu0 0
      %1147 = vmatpush1.bf16.msra.mxu0 %v1103
      %1148 = vmatprep.subr.bf16.mxu0 0
      %1149 = vmatpush1.bf16.msra.mxu0 %v1104
      %1150 = vmatprep.subr.bf16.mxu0 0
      %1151 = vmatpush1.bf16.msra.mxu0 %v1105
      %1152 = vmatprep.subr.bf16.mxu0 0
      %1153 = vmatpush1.bf16.msra.mxu0 %v1106
      %1154 = vmatprep.subr.bf16.mxu0 0
      %1155 = vmatpush1.bf16.msra.mxu0 %v1107
      %1156 = vmatprep.mubr.bf16.mxu0 %v958
      %1157 = vmatmul.mubr.bf16.gmra.mrb[0].mxu0 %v957
      %v1158 = vpop.f32.mrb[0].mxu0
      %v1159 = vadd.f32 %v1026, %v1158
      %v1160 = vpop.f32.mrb[0].mxu0
      %v1161 = vpop.f32.mrb[0].mxu0
      %v1162 = vadd.f32 %v1026, %v1161
      %v1163 = vpop.f32.mrb[0].mxu0
      %1164 = vmatprep.mubr.bf16.mxu0 %v960
      %1165 = vmatmul.mubr.bf16.gmra.mrb[0].mxu0 %v959
      %v1166 = vpop.f32.mrb[0].mxu0
      %v1167 = vadd.f32 %v1026, %v1166
      %v1168 = vpop.f32.mrb[0].mxu0
      %v1169 = vpop.f32.mrb[0].mxu0
      %v1170 = vadd.f32 %v1026, %v1169
      %v1171 = vpop.f32.mrb[0].mxu0
      %1172 = vmatprep.mubr.bf16.mxu0 %v962
      %1173 = vmatmul.mubr.bf16.gmra.mrb[0].mxu0 %v961
      %v1174 = vpop.f32.mrb[0].mxu0
      %v1175 = vadd.f32 %v1026, %v1174
      %v1176 = vpop.f32.mrb[0].mxu0
      %v1177 = vpop.f32.mrb[0].mxu0
      %v1178 = vadd.f32 %v1026, %v1177
      %v1179 = vpop.f32.mrb[0].mxu0
      %1180 = vmatprep.mubr.bf16.mxu0 %v964
      %1181 = vmatmul.mubr.bf16.gmra.mrb[0].mxu0 %v963
      %v1182 = vpop.f32.mrb[0].mxu0
      %v1183 = vadd.f32 %v1026, %v1182
      %v1184 = vpop.f32.mrb[0].mxu0
      %v1185 = vpop.f32.mrb[0].mxu0
      %v1186 = vadd.f32 %v1026, %v1185
      %v1187 = vpop.f32.mrb[0].mxu0
      %1188 = vmatprep.mubr.bf16.mxu0 %v966
      %1189 = vmatmul.mubr.bf16.gmra.mrb[0].mxu0 %v965
      %v1190 = vpop.f32.mrb[0].mxu0
      %v1191 = vadd.f32 %v1026, %v1190
      %v1192 = vpop.f32.mrb[0].mxu0
      %v1193 = vpop.f32.mrb[0].mxu0
      %v1194 = vadd.f32 %v1026, %v1193
      %v1195 = vpop.f32.mrb[0].mxu0
      %1196 = vmatprep.mubr.bf16.mxu0 %v968
      %1197 = vmatmul.mubr.bf16.gmra.mrb[0].mxu0 %v967
      %v1198 = vpop.f32.mrb[0].mxu0
      %v1199 = vadd.f32 %v1026, %v1198
      %v1200 = vpop.f32.mrb[0].mxu0
      %v1201 = vpop.f32.mrb[0].mxu0
      %v1202 = vadd.f32 %v1026, %v1201
      %v1203 = vpop.f32.mrb[0].mxu0
      %1204 = vmatprep.mubr.bf16.mxu0 %v970
      %1205 = vmatmul.mubr.bf16.gmra.mrb[0].mxu0 %v969
      %v1206 = vpop.f32.mrb[0].mxu0
      %v1207 = vadd.f32 %v1026, %v1206
      %v1208 = vpop.f32.mrb[0].mxu0
      %v1209 = vpop.f32.mrb[0].mxu0
      %v1210 = vadd.f32 %v1026, %v1209
      %v1211 = vpop.f32.mrb[0].mxu0
      %1212 = vmatprep.mubr.bf16.mxu0 %v972
      %1213 = vmatmul.mubr.bf16.gmra.mrb[0].mxu0 %v971
      %v1214 = vpop.f32.mrb[0].mxu0
      %v1215 = vadd.f32 %v1026, %v1214
      %v1216 = vpop.f32.mrb[0].mxu0
      %v1217 = vpop.f32.mrb[0].mxu0
      %v1218 = vadd.f32 %v1026, %v1217
      %v1219 = vpop.f32.mrb[0].mxu0
      %1220 = vmatprep.mubr.bf16.mxu0 %v974
      %1221 = vmatmul.mubr.bf16.gmra.mrb[0].mxu0 %v973
      %v1222 = vpop.f32.mrb[0].mxu0
      %v1223 = vadd.f32 %v1026, %v1222
      %v1224 = vpop.f32.mrb[0].mxu0
      %v1225 = vpop.f32.mrb[0].mxu0
      %v1226 = vadd.f32 %v1026, %v1225
      %v1227 = vpop.f32.mrb[0].mxu0
      %1228 = vmatprep.mubr.bf16.mxu0 %v976
      %1229 = vmatmul.mubr.bf16.gmra.mrb[0].mxu0 %v975
      %v1230 = vpop.f32.mrb[0].mxu0
      %v1231 = vadd.f32 %v1026, %v1230
      %v1232 = vpop.f32.mrb[0].mxu0
      %v1233 = vpop.f32.mrb[0].mxu0
      %v1234 = vadd.f32 %v1026, %v1233
      %v1235 = vpop.f32.mrb[0].mxu0
      %1236 = vmatprep.mubr.bf16.mxu0 %v978
      %1237 = vmatmul.mubr.bf16.gmra.mrb[0].mxu0 %v977
      %v1238 = vpop.f32.mrb[0].mxu0
      %v1239 = vadd.f32 %v1026, %v1238
      %v1240 = vpop.f32.mrb[0].mxu0
      %v1241 = vpop.f32.mrb[0].mxu0
      %v1242 = vadd.f32 %v1026, %v1241
      %v1243 = vpop.f32.mrb[0].mxu0
      %1244 = vmatprep.mubr.bf16.mxu0 %v980
      %1245 = vmatmul.mubr.bf16.gmra.mrb[0].mxu0 %v979
      %v1246 = vpop.f32.mrb[0].mxu0
      %v1247 = vadd.f32 %v1026, %v1246
      %v1248 = vpop.f32.mrb[0].mxu0
      %v1249 = vpop.f32.mrb[0].mxu0
      %v1250 = vadd.f32 %v1026, %v1249
      %v1251 = vpop.f32.mrb[0].mxu0
      %1252 = vmatprep.mubr.bf16.mxu0 %v982
      %1253 = vmatmul.mubr.bf16.gmra.mrb[0].mxu0 %v981
      %v1254 = vpop.f32.mrb[0].mxu0
      %v1255 = vadd.f32 %v1026, %v1254
      %v1256 = vpop.f32.mrb[0].mxu0
      %v1257 = vpop.f32.mrb[0].mxu0
      %v1258 = vadd.f32 %v1026, %v1257
      %v1259 = vpop.f32.mrb[0].mxu0
      %1260 = vmatprep.mubr.bf16.mxu0 %v984
      %1261 = vmatmul.mubr.bf16.gmra.mrb[0].mxu0 %v983
      %v1262 = vpop.f32.mrb[0].mxu0
      %v1263 = vadd.f32 %v1026, %v1262
      %v1264 = vpop.f32.mrb[0].mxu0
      %v1265 = vpop.f32.mrb[0].mxu0
      %v1266 = vadd.f32 %v1026, %v1265
      %v1267 = vpop.f32.mrb[0].mxu0
      %1268 = vmatprep.mubr.bf16.mxu0 %v986
      %1269 = vmatmul.mubr.bf16.gmra.mrb[0].mxu0 %v985
      %v1270 = vpop.f32.mrb[0].mxu0
      %v1271 = vadd.f32 %v1026, %v1270
      %v1272 = vpop.f32.mrb[0].mxu0
      %v1273 = vpop.f32.mrb[0].mxu0
      %v1274 = vadd.f32 %v1026, %v1273
      %v1275 = vpop.f32.mrb[0].mxu0
      %1276 = vmatprep.mubr.bf16.mxu0 %v988
      %1277 = vmatmul.mubr.bf16.gmra.mrb[0].mxu0 %v987
      %v1278 = vpop.f32.mrb[0].mxu0
      %v1279 = vadd.f32 %v1026, %v1278
      %v1280 = vpop.f32.mrb[0].mxu0
      %v1281 = vpop.f32.mrb[0].mxu0
      %v1282 = vadd.f32 %v1026, %v1281
      %v1283 = vpop.f32.mrb[0].mxu0
      %1284 = vdwg.mxu0
      %v1285 = vmax.f32 %v1159, 0.0
      %v1286 = vmax.f32 %v1162, 0.0
      %v1287 = vmax.f32 %v1167, 0.0
      %v1288 = vmax.f32 %v1170, 0.0
      %v1289 = vmax.f32 %v1175, 0.0
      %v1290 = vmax.f32 %v1178, 0.0
      %v1291 = vmax.f32 %v1183, 0.0
      %v1292 = vmax.f32 %v1186, 0.0
      %v1293 = vmax.f32 %v1191, 0.0
      %v1294 = vmax.f32 %v1194, 0.0
      %v1295 = vmax.f32 %v1199, 0.0
      %v1296 = vmax.f32 %v1202, 0.0
      %v1297 = vmax.f32 %v1207, 0.0
      %v1298 = vmax.f32 %v1210, 0.0
      %v1299 = vmax.f32 %v1215, 0.0
      %v1300 = vmax.f32 %v1218, 0.0
      %v1301 = vmax.f32 %v1223, 0.0
      %v1302 = vmax.f32 %v1226, 0.0
      %v1303 = vmax.f32 %v1231, 0.0
      %v1304 = vmax.f32 %v1234, 0.0
      %v1305 = vmax.f32 %v1239, 0.0
      %v1306 = vmax.f32 %v1242, 0.0
      %v1307 = vmax.f32 %v1247, 0.0
      %v1308 = vmax.f32 %v1250, 0.0
      %v1309 = vmax.f32 %v1255, 0.0
      %v1310 = vmax.f32 %v1258, 0.0
      %v1311 = vmax.f32 %v1263, 0.0
      %v1312 = vmax.f32 %v1266, 0.0
      %v1313 = vmax.f32 %v1271, 0.0
      %v1314 = vmax.f32 %v1274, 0.0
      %v1315 = vmax.f32 %v1279, 0.0
      %v1316 = vmax.f32 %v1282, 0.0
      %v1317 = vpack.c.bf16 %v1286, %v1285
      %v1318 = vpack.c.bf16 %v1288, %v1287
      %v1319 = vpack.c.bf16 %v1290, %v1289
      %v1320 = vpack.c.bf16 %v1292, %v1291
      %v1321 = vpack.c.bf16 %v1294, %v1293
      %v1322 = vpack.c.bf16 %v1296, %v1295
      %v1323 = vpack.c.bf16 %v1298, %v1297
      %v1324 = vpack.c.bf16 %v1300, %v1299
      %v1325 = vpack.c.bf16 %v1302, %v1301
      %v1326 = vpack.c.bf16 %v1304, %v1303
      %v1327 = vpack.c.bf16 %v1306, %v1305
      %v1328 = vpack.c.bf16 %v1308, %v1307
      %v1329 = vpack.c.bf16 %v1310, %v1309
      %v1330 = vpack.c.bf16 %v1312, %v1311
      %v1331 = vpack.c.bf16 %v1314, %v1313
      %v1332 = vpack.c.bf16 %v1316, %v1315
      %v1349 = vunpack.c.l.b16 %v1317
      %v1350 = vunpack.c.h.b16 %v1317
      %v1351 = vunpack.c.l.b16 %v1318
      %v1352 = vunpack.c.h.b16 %v1318
      %v1353 = vunpack.c.l.b16 %v1319
      %v1354 = vunpack.c.h.b16 %v1319
      %v1355 = vunpack.c.l.b16 %v1320
      %v1356 = vunpack.c.h.b16 %v1320
      %v1357 = vunpack.c.l.b16 %v1321
      %v1358 = vunpack.c.h.b16 %v1321
      %v1359 = vunpack.c.l.b16 %v1322
      %v1360 = vunpack.c.h.b16 %v1322
      %v1361 = vunpack.c.l.b16 %v1323
      %v1362 = vunpack.c.h.b16 %v1323
      %v1363 = vunpack.c.l.b16 %v1324
      %v1364 = vunpack.c.h.b16 %v1324
      %v1365 = vunpack.c.l.b16 %v1325
      %v1366 = vunpack.c.h.b16 %v1325
      %v1367 = vunpack.c.l.b16 %v1326
      %v1368 = vunpack.c.h.b16 %v1326
      %v1369 = vunpack.c.l.b16 %v1327
      %v1370 = vunpack.c.h.b16 %v1327
      %v1371 = vunpack.c.l.b16 %v1328
      %v1372 = vunpack.c.h.b16 %v1328
      %v1373 = vunpack.c.l.b16 %v1329
      %v1374 = vunpack.c.h.b16 %v1329
      %v1375 = vunpack.c.l.b16 %v1330
      %v1376 = vunpack.c.h.b16 %v1330
      %v1377 = vunpack.c.l.b16 %v1331
      %v1378 = vunpack.c.h.b16 %v1331
      %v1379 = vunpack.c.l.b16 %v1332
      %v1380 = vunpack.c.h.b16 %v1332
      %v1381 = vpack.c.b16 %v1349, %v1349
      %v1382 = vpack.c.b16 %v1350, %v1350
      %v1383 = vpack.c.b16 %v1351, %v1351
      %v1384 = vpack.c.b16 %v1352, %v1352
      %v1385 = vpack.c.b16 %v1353, %v1353
      %v1386 = vpack.c.b16 %v1354, %v1354
      %v1387 = vpack.c.b16 %v1355, %v1355
      %v1388 = vpack.c.b16 %v1356, %v1356
      %v1389 = vpack.c.b16 %v1357, %v1357
      %v1390 = vpack.c.b16 %v1358, %v1358
      %v1391 = vpack.c.b16 %v1359, %v1359
      %v1392 = vpack.c.b16 %v1360, %v1360
      %v1393 = vpack.c.b16 %v1361, %v1361
      %v1394 = vpack.c.b16 %v1362, %v1362
      %v1395 = vpack.c.b16 %v1363, %v1363
      %v1396 = vpack.c.b16 %v1364, %v1364
      %v1397 = vpack.c.b16 %v1365, %v1365
      %v1398 = vpack.c.b16 %v1366, %v1366
      %v1399 = vpack.c.b16 %v1367, %v1367
      %v1400 = vpack.c.b16 %v1368, %v1368
      %v1401 = vpack.c.b16 %v1369, %v1369
      %v1402 = vpack.c.b16 %v1370, %v1370
      %v1403 = vpack.c.b16 %v1371, %v1371
      %v1404 = vpack.c.b16 %v1372, %v1372
      %v1405 = vpack.c.b16 %v1373, %v1373
      %v1406 = vpack.c.b16 %v1374, %v1374
      %v1407 = vpack.c.b16 %v1375, %v1375
      %v1408 = vpack.c.b16 %v1376, %v1376
      %v1409 = vpack.c.b16 %v1377, %v1377
      %v1410 = vpack.c.b16 %v1378, %v1378
      %v1411 = vpack.c.b16 %v1379, %v1379
      %v1412 = vpack.c.b16 %v1380, %v1380
      %1445 = vst [vmem:[#allocation9] sm:$0xf] %v1381
      %1446 = vst [vmem:[#allocation9 + $0x4] sm:$0xf] %v1382
      %1447 = vst [vmem:[#allocation9 + $0x8] sm:$0xf] %v1383
      %1448 = vst [vmem:[#allocation9 + $0xc] sm:$0xf] %v1384
      %1449 = vst [vmem:[#allocation9 + $0x10] sm:$0xf] %v1385
      %1450 = vst [vmem:[#allocation9 + $0x14] sm:$0xf] %v1386
      %1451 = vst [vmem:[#allocation9 + $0x18] sm:$0xf] %v1387
      %1452 = vst [vmem:[#allocation9 + $0x1c] sm:$0xf] %v1388
      %1453 = vst [vmem:[#allocation9 + $0x20] sm:$0xf] %v1389
      %1454 = vst [vmem:[#allocation9 + $0x24] sm:$0xf] %v1390
      %1455 = vst [vmem:[#allocation9 + $0x28] sm:$0xf] %v1391
      %1456 = vst [vmem:[#allocation9 + $0x2c] sm:$0xf] %v1392
      %1457 = vst [vmem:[#allocation9 + $0x30] sm:$0xf] %v1393
      %1458 = vst [vmem:[#allocation9 + $0x34] sm:$0xf] %v1394
      %1459 = vst [vmem:[#allocation9 + $0x38] sm:$0xf] %v1395
      %1460 = vst [vmem:[#allocation9 + $0x3c] sm:$0xf] %v1396
      %1461 = vst [vmem:[#allocation9 + $0x40] sm:$0xf] %v1397
      %1462 = vst [vmem:[#allocation9 + $0x44] sm:$0xf] %v1398
      %1463 = vst [vmem:[#allocation9 + $0x48] sm:$0xf] %v1399
      %1464 = vst [vmem:[#allocation9 + $0x4c] sm:$0xf] %v1400
      %1465 = vst [vmem:[#allocation9 + $0x50] sm:$0xf] %v1401
      %1466 = vst [vmem:[#allocation9 + $0x54] sm:$0xf] %v1402
      %1467 = vst [vmem:[#allocation9 + $0x58] sm:$0xf] %v1403
      %1468 = vst [vmem:[#allocation9 + $0x5c] sm:$0xf] %v1404
      %1469 = vst [vmem:[#allocation9 + $0x60] sm:$0xf] %v1405
      %1470 = vst [vmem:[#allocation9 + $0x64] sm:$0xf] %v1406
      %1471 = vst [vmem:[#allocation9 + $0x68] sm:$0xf] %v1407
      %1472 = vst [vmem:[#allocation9 + $0x6c] sm:$0xf] %v1408
      %1473 = vst [vmem:[#allocation9 + $0x70] sm:$0xf] %v1409
      %1474 = vst [vmem:[#allocation9 + $0x74] sm:$0xf] %v1410
      %1475 = vst [vmem:[#allocation9 + $0x78] sm:$0xf] %v1411
      %1476 = vst [vmem:[#allocation9 + $0x7c] sm:$0xf] %v1412
    $region41: #{tpu_custom_call.1} parent=1 // pred_fallthru
      _
    // Predicated region
    $region42: #{tpu_custom_call.1} parent=1 // pred_check
      _
    $region43: #{tpu_custom_call.1} parent=1 // pred_check_branch
      %1478 = sbr.rel (0) target = $region45
    $region44: #{tpu_custom_call.1} parent=1 // pred_region
      %s1480 = ssub.s32 2048, 2048
      %1481 = vsyncadd [#allocation6], %s1480
      %s1482 = sshll.u32 [#allocation9], 4
      %s1483 = int_to_ptr.vmem [resolvable:$true] %s1482
      %1488 = dma.vmem_to_hbm [thread:$0]  %s1483, 2048, %s6, [#allocation6], 64, 64, 4
    $region45: #{tpu_custom_call.1} parent=1 // pred_fallthru
      _
    // Predicated region
    $region46: #{tpu_custom_call.1} parent=1 // pred_check
      _
    $region47: #{tpu_custom_call.1} parent=1 // pred_check_branch
      %1490 = sbr.rel (0) target = $region49
    $region48: #{tpu_custom_call.1} parent=1 // pred_region
      %1491 = dma.done [#allocation6], 2048
    $region49: #{tpu_custom_call.1} parent=1 // pred_fallthru
      _
    %1492 = vsyncpa [#allocation5], 1
    %1493 = vsyncpa [#allocation8], 1
    %1494 = vsyncpa [#allocation6], 1

</llo_original>
